<compile_context>
chip_gen: v7x
topology: tpu7x:2x2x1
jax: 0.10.0
libtpu: 0.0.40
codegen_flags: <defaults>
</compile_context>

<pallas_src>
import math
import functools

import jax
import jax.numpy as jnp
import numpy as np
from jax.experimental import pallas as pl
from jax.experimental.pallas import tpu as pltpu


# ----------------------------- in-kernel helpers -----------------------------

def _gelu_tanh(x):
    # tanh-approximate GELU (EUP). Deviates from PyTorch's exact erf GELU by <~1e-3.
    c = math.sqrt(2.0 / math.pi)
    return 0.5 * x * (1.0 + jnp.tanh(c * (x + 0.044715 * x * x * x)))


def _layer_norm(y, gamma, beta, eps=1e-5):
    mu = jnp.mean(y, axis=-1, keepdims=True)
    var = jnp.mean((y - mu) ** 2, axis=-1, keepdims=True)
    return (y - mu) * jax.lax.rsqrt(var + eps) * gamma + beta


# ------------------- kernel 1: flash attention + out-proj + LN1 ---------------

def attn_kernel(x_ref, q_ref, k_ref, v_ref, mask_ref,
                wo_ref, bo_ref, g1_ref, be1_ref,
                o_ref,
                m_sc, l_sc, acc_sc, attn_sc,
                *, causal, tq, tk):
    f32 = jnp.float32
    bf16 = jnp.bfloat16
    kv = pl.program_id(2)

    @pl.when(kv == 0)
    def _init():
        m_sc[...] = jnp.full(m_sc.shape, -jnp.inf, m_sc.dtype)
        l_sc[...] = jnp.zeros(l_sc.shape, l_sc.dtype)
        acc_sc[...] = jnp.zeros(acc_sc.shape, acc_sc.dtype)

    def _compute():
        q = q_ref[0]                                   # (H, tq, hd) bf16, pre-scaled
        k = k_ref[0]                                   # (H, tk, hd) bf16
        v = v_ref[0]                                   # (H, tk, hd) bf16
        s = jnp.einsum("hqd,hkd->hqk", q, k, preferred_element_type=f32)
        s = s + mask_ref[...][None, :, :]              # additive mask tile (tq, tk)
        m_new = jnp.maximum(m_sc[...], jnp.max(s, axis=-1, keepdims=True))
        alpha = jnp.exp(m_sc[...] - m_new)
        p = jnp.exp(s - m_new)                         # f32 exp
        l_sc[...] = alpha * l_sc[...] + jnp.sum(p, axis=-1, keepdims=True)
        acc_sc[...] = alpha * acc_sc[...] + jnp.einsum(
            "hqk,hkd->hqd", p.astype(bf16), v, preferred_element_type=f32)
        m_sc[...] = m_new

    if causal:
        qi = pl.program_id(1)
        # KV block strictly above the query block is fully masked -> skip compute.
        @pl.when(kv * tk < (qi + 1) * tq)
        def _():
            _compute()
    else:
        _compute()

    @pl.when(kv == pl.num_programs(2) - 1)
    def _finalize():
        n_head, _, hd = acc_sc.shape
        inv_l = pl.reciprocal(l_sc[...], approx=True)            # (H, tq, 1)
        # Concatenate heads into a lane-contiguous (tq, D) bf16 scratch.
        for h in range(n_head):                                  # static, tiny work
            attn_sc[:, h * hd:(h + 1) * hd] = (acc_sc[h] * inv_l[h]).astype(bf16)
        proj = jnp.dot(attn_sc[...], wo_ref[...],
                       preferred_element_type=f32) + bo_ref[...]
        x = x_ref[0].astype(f32)
        o_ref[0] = _layer_norm(x + proj, g1_ref[...], be1_ref[...]).astype(o_ref.dtype)


# ----------------- kernel 2: Dff-tiled FFN + residual + LN2 -------------------

def ffn_kernel(x1_ref, w1_ref, b1_ref, w2_ref, b2_ref, g2_ref, be2_ref,
               o_ref, ff_sc):
    f32 = jnp.float32
    bf16 = jnp.bfloat16
    f = pl.program_id(2)

    @pl.when(f == 0)
    def _init():
        ff_sc[...] = jnp.zeros(ff_sc.shape, ff_sc.dtype)

    x1 = x1_ref[0].astype(f32)
    h = jnp.dot(x1.astype(bf16), w1_ref[...], preferred_element_type=f32) + b1_ref[...]
    h = _gelu_tanh(h)
    ff_sc[...] += jnp.dot(h.astype(bf16), w2_ref[...], preferred_element_type=f32)

    @pl.when(f == pl.num_programs(2) - 1)
    def _finalize():
        y = x1 + ff_sc[...] + b2_ref[...]
        o_ref[0] = _layer_norm(y, g2_ref[...], be2_ref[...]).astype(o_ref.dtype)


# --------------------------------- wrapper ------------------------------------

def _choose_tile(n, cap, multiple):
    """Largest divisor of n that is <= cap and a multiple of `multiple`;
    falls back to the whole axis (always layout-legal)."""
    if n <= cap:
        return n
    for t in range(cap, 0, -1):
        if n % t == 0 and t % multiple == 0:
            return t
    return n


def _vmem_limit_bytes(frac=0.8):
    try:
        return int(frac * pltpu.get_tpu_info().vmem_capacity_bytes)
    except Exception:
        return None   # fall back to Mosaic's default scoped limit


def decoder_block(x, target_mask, params, n_head, *,
                  max_q_tile=256, max_kv_tile=256, max_dff_tile=512,
                  causal=False):
    B, S, D = x.shape
    Dff = params["w1"].shape[0]
    assert D % n_head == 0
    hd = D // n_head
    bf16, f32 = jnp.bfloat16, jnp.float32

    tq = _choose_tile(S, max_q_tile, 8)
    tk = _choose_tile(S, max_kv_tile, 128)     # mask block lane dim needs %128 or ==S
    tdff = _choose_tile(Dff, max_dff_tile, 128)
    nq, nkv, ndff = S // tq, S // tk, Dff // tdff

    def row(v):  # biases / LN params -> (1, N) f32
        return jnp.asarray(v, f32).reshape(1, -1)

    # ---- hoisted fused QKV projection: one XLA GEMM, bf16 in / f32 acc ----
    w_qkv_t = jnp.concatenate(
        [jnp.asarray(params["wq"]).T, jnp.asarray(params["wk"]).T,
         jnp.asarray(params["wv"]).T], axis=1).astype(bf16)            # (D, 3D)
    b_qkv = jnp.concatenate(
        [params["bq"], params["bk"], params["bv"]]).astype(f32)         # (3D,)
    qkv = jnp.dot(x.astype(bf16), w_qkv_t, preferred_element_type=f32) + b_qkv
    scale = 1.0 / math.sqrt(hd)

    def to_heads(t):  # (B, S, D) -> (B, H, S, hd), bf16
        return t.reshape(B, S, n_head, hd).transpose(0, 2, 1, 3).astype(bf16)

    q_h = to_heads(qkv[..., :D] * scale)        # fold 1/sqrt(hd) into Q once
    k_h = to_heads(qkv[..., D:2 * D])
    v_h = to_heads(qkv[..., 2 * D:])

    mask = jnp.asarray(target_mask, f32)
    wo_t = jnp.asarray(params["wo"]).T.astype(bf16)    # (D, D)
    w1_t = jnp.asarray(params["w1"]).T.astype(bf16)    # (D, Dff)
    w2_t = jnp.asarray(params["w2"]).T.astype(bf16)    # (Dff, D)

    vmem_limit = _vmem_limit_bytes()

    def fixed(shape):  # grid-invariant operand (weights / biases / LN params)
        zeros = (0,) * len(shape)
        return pl.BlockSpec(shape, lambda b, q, r, _z=zeros: _z)

    # ------------------ attention + output projection + LN1 ------------------
    cost_a = pl.CostEstimate(
        flops=int(B * (4 * S * S * D + 2 * S * D * D)),
        transcendentals=int(B * n_head * S * S),
        bytes_accessed=int(2 * B * S * D * 4 + 3 * B * S * D * 2 + S * S * 4 + D * D * 2))

    x1 = pl.pallas_call(
        functools.partial(attn_kernel, causal=causal, tq=tq, tk=tk),
        out_shape=jax.ShapeDtypeStruct((B, S, D), x.dtype),
        grid=(B, nq, nkv),
        in_specs=[
            pl.BlockSpec((1, tq, D), lambda b, q, r: (b, q, 0)),               # x residual
            pl.BlockSpec((1, n_head, tq, hd), lambda b, q, r: (b, 0, q, 0)),   # Q heads
            pl.BlockSpec((1, n_head, tk, hd), lambda b, q, r: (b, 0, r, 0)),   # K heads
            pl.BlockSpec((1, n_head, tk, hd), lambda b, q, r: (b, 0, r, 0)),   # V heads
            pl.BlockSpec((tq, tk), lambda b, q, r: (q, r)),                    # mask tile
            fixed((D, D)), fixed((1, D)),                                      # wo, bo
            fixed((1, D)), fixed((1, D)),                                      # g1, be1
        ],
        out_specs=pl.BlockSpec((1, tq, D), lambda b, q, r: (b, q, 0)),
        scratch_shapes=[
            pltpu.VMEM((n_head, tq, 1), f32),     # running max
            pltpu.VMEM((n_head, tq, 1), f32),     # running sum
            pltpu.VMEM((n_head, tq, hd), f32),    # unnormalized attention accumulator
            pltpu.VMEM((tq, D), bf16),            # concatenated heads for out-proj
        ],
        compiler_params=pltpu.CompilerParams(
            dimension_semantics=("parallel", "parallel", "arbitrary"),
            vmem_limit_bytes=vmem_limit),
        cost_estimate=cost_a,
    )(x, q_h, k_h, v_h, mask, wo_t, row(params["bo"]),
      row(params["g1"]), row(params["be1"]))

    # ------------------------ Dff-tiled FFN + LN2 -----------------------------
    cost_b = pl.CostEstimate(
        flops=int(4 * B * S * D * Dff),
        transcendentals=int(B * S * Dff),
        bytes_accessed=int(2 * B * S * D * 4 + 2 * D * Dff * 2))

    out = pl.pallas_call(
        ffn_kernel,
        out_shape=jax.ShapeDtypeStruct((B, S, D), x.dtype),
        grid=(B, nq, ndff),
        in_specs=[
            pl.BlockSpec((1, tq, D), lambda b, q, r: (b, q, 0)),   # x1 (residual + input)
            pl.BlockSpec((D, tdff), lambda b, q, r: (0, r)),       # w1 chunk
            pl.BlockSpec((1, tdff), lambda b, q, r: (0, r)),       # b1 chunk
            pl.BlockSpec((tdff, D), lambda b, q, r: (r, 0)),       # w2 chunk
            fixed((1, D)),                                         # b2 (added once)
            fixed((1, D)), fixed((1, D)),                          # g2, be2
        ],
        out_specs=pl.BlockSpec((1, tq, D), lambda b, q, r: (b, q, 0)),
        scratch_shapes=[pltpu.VMEM((tq, D), f32)],
        compiler_params=pltpu.CompilerParams(
            dimension_semantics=("parallel", "parallel", "arbitrary"),
            vmem_limit_bytes=vmem_limit),
        cost_estimate=cost_b,
    )(x1, w1_t, row(params["fb1"]), w2_t, row(params["fb2"]),
      row(params["g2"]), row(params["be2"]))

    return out


# ------------------------------ pure-JAX reference ----------------------------

def decoder_block_reference(x, mask, p, n_head):
    B, S, D = x.shape
    hd = D // n_head

    def ln(y, g, b, eps=1e-5):
        mu = jnp.mean(y, axis=-1, keepdims=True)
        var = jnp.mean((y - mu) ** 2, axis=-1, keepdims=True)
        return (y - mu) / jnp.sqrt(var + eps) * g + b

    def one(xb):
        q = xb @ p["wq"].T + p["bq"]
        k = xb @ p["wk"].T + p["bk"]
        v = xb @ p["wv"].T + p["bv"]
        qh = q.reshape(S, n_head, hd).transpose(1, 0, 2)
        kh = k.reshape(S, n_head, hd).transpose(1, 0, 2)
        vh = v.reshape(S, n_head, hd).transpose(1, 0, 2)
        s = jnp.einsum("hqd,hkd->hqk", qh, kh) / math.sqrt(hd) + mask
        a = jax.nn.softmax(s, axis=-1)
        o = jnp.einsum("hqk,hkd->hqd", a, vh).transpose(1, 0, 2).reshape(S, D)
        o = o @ p["wo"].T + p["bo"]
        x1 = ln(xb + o, p["g1"], p["be1"])
        h = jax.nn.gelu(x1 @ p["w1"].T + p["fb1"], approximate=False)
        f = h @ p["w2"].T + p["fb2"]
        return ln(x1 + f, p["g2"], p["be2"])

    return jax.vmap(one)(x)


# ---------------------------------- main --------------------------------------

if __name__ == "__main__":
    B, S, D, n_head, Dff = 2, 8, 32, 4, 64

    key = jax.random.PRNGKey(0)
    ks = jax.random.split(key, 18)
    rnd = lambda k, shape, s=0.05: (jax.random.normal(k, shape, jnp.float32) * s)

    params = {
        "wq": rnd(ks[0], (D, D)),  "wk": rnd(ks[1], (D, D)),  "wv": rnd(ks[2], (D, D)),
        "bq": rnd(ks[3], (D,)),    "bk": rnd(ks[4], (D,)),    "bv": rnd(ks[5], (D,)),
        "wo": rnd(ks[6], (D, D)),  "bo": rnd(ks[7], (D,)),
        "g1": 1.0 + rnd(ks[8], (D,), 0.1),  "be1": rnd(ks[9], (D,), 0.1),
        "w1": rnd(ks[10], (Dff, D)), "fb1": rnd(ks[11], (Dff,)),
        "w2": rnd(ks[12], (D, Dff)), "fb2": rnd(ks[13], (D,)),
        "g2": 1.0 + rnd(ks[14], (D,), 0.1), "be2": rnd(ks[15], (D,), 0.1),
    }

    x = jax.random.normal(ks[16], (B, S, D), jnp.float32)
    # causal target mask, additive float form (PyTorch float attn_mask semantics)
    causal_bool = jnp.triu(jnp.ones((S, S), dtype=bool), k=1)
    target_mask = jnp.where(causal_bool, -1e9, 0.0).astype(jnp.float32)

    out = decoder_block(x, target_mask, params, n_head, causal=True)
    out = jax.block_until_ready(out)

    ref = jax.block_until_ready(decoder_block_reference(x, target_mask, params, n_head))
    # bf16 matmul inputs + approx reciprocal + tanh GELU vs exact-f32 reference
    np.testing.assert_allclose(np.asarray(out), np.asarray(ref), rtol=2e-2, atol=2e-2)

    print("KERNEL_OK")
</pallas_src>

<mosaic_0001>
module attributes {stable_mosaic.version = 11 : i64} {
  func.func @attn_kernel(%arg0: i32, %arg1: i32, %arg2: i32, %arg3: memref<1x8x32xf32, #tpu.memory_space<vmem>>, %arg4: memref<1x4x8x8xbf16, #tpu.memory_space<vmem>>, %arg5: memref<1x4x8x8xbf16, #tpu.memory_space<vmem>>, %arg6: memref<1x4x8x8xbf16, #tpu.memory_space<vmem>>, %arg7: memref<8x8xf32, #tpu.memory_space<vmem>>, %arg8: memref<32x32xbf16, #tpu.memory_space<vmem>>, %arg9: memref<1x32xf32, #tpu.memory_space<vmem>>, %arg10: memref<1x32xf32, #tpu.memory_space<vmem>>, %arg11: memref<1x32xf32, #tpu.memory_space<vmem>>, %arg12: memref<1x8x32xf32, #tpu.memory_space<vmem>>, %arg13: memref<4x8x1xf32, #tpu.memory_space<vmem>>, %arg14: memref<4x8x1xf32, #tpu.memory_space<vmem>>, %arg15: memref<4x8x8xf32, #tpu.memory_space<vmem>>, %arg16: memref<8x32xbf16, #tpu.memory_space<vmem>>) attributes {dimension_semantics = [#tpu.dimension_semantics<parallel>, #tpu.dimension_semantics<parallel>, #tpu.dimension_semantics<arbitrary>], iteration_bounds = array<i64: 2, 1, 1>, scalar_prefetch = 0 : i64, scratch_operands = 4 : i64, tpu.core_type = #tpu.core_type<tc>, window_params = [{transform_indices = @transform_0, window_bounds = array<i64: 1, 8, 32>}, {transform_indices = @transform_1, window_bounds = array<i64: 1, 4, 8, 8>}, {transform_indices = @transform_2, window_bounds = array<i64: 1, 4, 8, 8>}, {transform_indices = @transform_3, window_bounds = array<i64: 1, 4, 8, 8>}, {transform_indices = @transform_4, window_bounds = array<i64: 8, 8>}, {pipeline_mode = #tpu.pipeline_mode<synchronous>, transform_indices = @transform_5, window_bounds = array<i64: 32, 32>}, {pipeline_mode = #tpu.pipeline_mode<synchronous>, transform_indices = @transform_6, window_bounds = array<i64: 1, 32>}, {pipeline_mode = #tpu.pipeline_mode<synchronous>, transform_indices = @transform_7, window_bounds = array<i64: 1, 32>}, {pipeline_mode = #tpu.pipeline_mode<synchronous>, transform_indices = @transform_8, window_bounds = array<i64: 1, 32>}, {transform_indices = @transform_9, window_bounds = array<i64: 1, 8, 32>}]} {
    %c0_i32 = arith.constant 0 : i32
    %0 = arith.cmpi eq, %arg2, %c0_i32 : i32
    %1 = arith.extui %0 : i1 to i32
    %c0_i32_0 = arith.constant 0 : i32
    %2 = arith.cmpi ne, %1, %c0_i32_0 : i32
    scf.if %2 {
      %cst = arith.constant 0xFF800000 : f32
      %12 = vector.broadcast %cst : f32 to vector<4x8x1xf32>
      %c0 = arith.constant 0 : index
      %c0_5 = arith.constant 0 : index
      %c0_6 = arith.constant 0 : index
      %13 = vector.load %arg13[%c0, %c0_5, %c0_6] : memref<4x8x1xf32, #tpu.memory_space<vmem>>, vector<4x8x1xf32>
      tpu.vector_store %arg13[%c0, %c0_5, %c0_6], %12 {strides = array<i32>} : memref<4x8x1xf32, #tpu.memory_space<vmem>>, vector<4x8x1xf32>,
      %cst_7 = arith.constant 0.000000e+00 : f32
      %14 = vector.broadcast %cst_7 : f32 to vector<4x8x1xf32>
      %c0_8 = arith.constant 0 : index
      %c0_9 = arith.constant 0 : index
      %c0_10 = arith.constant 0 : index
      %15 = vector.load %arg14[%c0_8, %c0_9, %c0_10] : memref<4x8x1xf32, #tpu.memory_space<vmem>>, vector<4x8x1xf32>
      tpu.vector_store %arg14[%c0_8, %c0_9, %c0_10], %14 {strides = array<i32>} : memref<4x8x1xf32, #tpu.memory_space<vmem>>, vector<4x8x1xf32>,
      %cst_11 = arith.constant 0.000000e+00 : f32
      %16 = vector.broadcast %cst_11 : f32 to vector<4x8x8xf32>
      %c0_12 = arith.constant 0 : index
      %c0_13 = arith.constant 0 : index
      %c0_14 = arith.constant 0 : index
      %17 = vector.load %arg15[%c0_12, %c0_13, %c0_14] : memref<4x8x8xf32, #tpu.memory_space<vmem>>, vector<4x8x8xf32>
      tpu.vector_store %arg15[%c0_12, %c0_13, %c0_14], %16 {strides = array<i32>} : memref<4x8x8xf32, #tpu.memory_space<vmem>>, vector<4x8x8xf32>,
    } else {
    }
    %c8_i32 = arith.constant 8 : i32
    %3 = arith.muli %arg2, %c8_i32 : i32
    %c1_i32 = arith.constant 1 : i32
    %4 = arith.addi %arg1, %c1_i32 : i32
    %c8_i32_1 = arith.constant 8 : i32
    %5 = arith.muli %4, %c8_i32_1 : i32
    %6 = arith.cmpi slt, %3, %5 : i32
    %7 = arith.extui %6 : i1 to i32
    %c0_i32_2 = arith.constant 0 : i32
    %8 = arith.cmpi ne, %7, %c0_i32_2 : i32
    scf.if %8 {
      %c0 = arith.constant 0 : index
      %c0_5 = arith.constant 0 : index
      %c0_6 = arith.constant 0 : index
      %c0_7 = arith.constant 0 : index
      %12 = vector.load %arg4[%c0, %c0_5, %c0_6, %c0_7] : memref<1x4x8x8xbf16, #tpu.memory_space<vmem>>, vector<1x4x8x8xbf16>
      %13 = vector.shape_cast %12 : vector<1x4x8x8xbf16> to vector<4x8x8xbf16>
      %c0_8 = arith.constant 0 : index
      %c0_9 = arith.constant 0 : index
      %c0_10 = arith.constant 0 : index
      %c0_11 = arith.constant 0 : index
      %14 = vector.load %arg5[%c0_8, %c0_9, %c0_10, %c0_11] : memref<1x4x8x8xbf16, #tpu.memory_space<vmem>>, vector<1x4x8x8xbf16>
      %15 = vector.shape_cast %14 : vector<1x4x8x8xbf16> to vector<4x8x8xbf16>
      %c0_12 = arith.constant 0 : index
      %c0_13 = arith.constant 0 : index
      %c0_14 = arith.constant 0 : index
      %c0_15 = arith.constant 0 : index
      %16 = vector.load %arg6[%c0_12, %c0_13, %c0_14, %c0_15] : memref<1x4x8x8xbf16, #tpu.memory_space<vmem>>, vector<1x4x8x8xbf16>
      %17 = vector.shape_cast %16 : vector<1x4x8x8xbf16> to vector<4x8x8xbf16>
      "tpu.trace_start"() <{level = 10 : i32, message = "hqd,hkd->hqk"}> : () -> ()
      %cst = arith.constant dense<0.000000e+00> : vector<4x8x8xf32>
      %18 = tpu.matmul %13, %15, %cst {dimension_numbers = #tpu.dot_dimension_numbers<[2], [2], [1], [1], [0, 0, 0, 1, 1, 1], [0], [0]>} : vector<4x8x8xbf16>, vector<4x8x8xbf16>, vector<4x8x8xf32> -> vector<4x8x8xf32>
      "tpu.trace_stop"() : () -> ()
      %c0_16 = arith.constant 0 : index
      %c0_17 = arith.constant 0 : index
      %19 = vector.load %arg7[%c0_16, %c0_17] : memref<8x8xf32, #tpu.memory_space<vmem>>, vector<8x8xf32>
      %20 = vector.shape_cast %19 : vector<8x8xf32> to vector<1x8x8xf32>
      %21 = vector.broadcast %20 : vector<1x8x8xf32> to vector<4x8x8xf32>
      %22 = arith.addf %18, %21 : vector<4x8x8xf32>
      %c0_18 = arith.constant 0 : index
      %c0_19 = arith.constant 0 : index
      %c0_20 = arith.constant 0 : index
      %23 = vector.load %arg13[%c0_18, %c0_19, %c0_20] : memref<4x8x1xf32, #tpu.memory_space<vmem>>, vector<4x8x1xf32>
      %cst_21 = arith.constant dense<0xFF800000> : vector<4x8xf32>
      %24 = vector.multi_reduction <maximumf>, %22, %cst_21 [2] : vector<4x8x8xf32> to vector<4x8xf32>
      %25 = vector.shape_cast %24 : vector<4x8xf32> to vector<4x8x1xf32>
      %26 = arith.maximumf %23, %25 : vector<4x8x1xf32>
      %c0_22 = arith.constant 0 : index
      %c0_23 = arith.constant 0 : index
      %c0_24 = arith.constant 0 : index
      %27 = vector.load %arg13[%c0_22, %c0_23, %c0_24] : memref<4x8x1xf32, #tpu.memory_space<vmem>>, vector<4x8x1xf32>
      %28 = arith.subf %27, %26 : vector<4x8x1xf32>
      %29 = math.exp %28 : vector<4x8x1xf32>
      %30 = vector.broadcast %26 : vector<4x8x1xf32> to vector<4x8x8xf32>
      %31 = arith.subf %22, %30 : vector<4x8x8xf32>
      %32 = math.exp %31 : vector<4x8x8xf32>
      %c0_25 = arith.constant 0 : index
      %c0_26 = arith.constant 0 : index
      %c0_27 = arith.constant 0 : index
      %33 = vector.load %arg14[%c0_25, %c0_26, %c0_27] : memref<4x8x1xf32, #tpu.memory_space<vmem>>, vector<4x8x1xf32>
      %34 = arith.mulf %29, %33 : vector<4x8x1xf32>
      %cst_28 = arith.constant dense<0.000000e+00> : vector<4x8xf32>
      %35 = vector.multi_reduction <add>, %32, %cst_28 [2] : vector<4x8x8xf32> to vector<4x8xf32>
      %36 = vector.shape_cast %35 : vector<4x8xf32> to vector<4x8x1xf32>
      %37 = arith.addf %34, %36 : vector<4x8x1xf32>
      %c0_29 = arith.constant 0 : index
      %c0_30 = arith.constant 0 : index
      %c0_31 = arith.constant 0 : index
      %38 = vector.load %arg14[%c0_29, %c0_30, %c0_31] : memref<4x8x1xf32, #tpu.memory_space<vmem>>, vector<4x8x1xf32>
      tpu.vector_store %arg14[%c0_29, %c0_30, %c0_31], %37 {strides = array<i32>} : memref<4x8x1xf32, #tpu.memory_space<vmem>>, vector<4x8x1xf32>,
      %c0_32 = arith.constant 0 : index
      %c0_33 = arith.constant 0 : index
      %c0_34 = arith.constant 0 : index
      %39 = vector.load %arg15[%c0_32, %c0_33, %c0_34] : memref<4x8x8xf32, #tpu.memory_space<vmem>>, vector<4x8x8xf32>
      %40 = vector.broadcast %29 : vector<4x8x1xf32> to vector<4x8x8xf32>
      %41 = arith.mulf %40, %39 : vector<4x8x8xf32>
      %42 = arith.truncf %32 : vector<4x8x8xf32> to vector<4x8x8xbf16>
      "tpu.trace_start"() <{level = 10 : i32, message = "hqk,hkd->hqd"}> : () -> ()
      %cst_35 = arith.constant dense<0.000000e+00> : vector<4x8x8xf32>
      %43 = tpu.matmul %42, %17, %cst_35 {dimension_numbers = #tpu.dot_dimension_numbers<[2], [1], [1], [2], [0, 0, 0, 1, 1, 2], [0], [0]>} : vector<4x8x8xbf16>, vector<4x8x8xbf16>, vector<4x8x8xf32> -> vector<4x8x8xf32>
      "tpu.trace_stop"() : () -> ()
      %44 = arith.addf %41, %43 : vector<4x8x8xf32>
      %c0_36 = arith.constant 0 : index
      %c0_37 = arith.constant 0 : index
      %c0_38 = arith.constant 0 : index
      %45 = vector.load %arg15[%c0_36, %c0_37, %c0_38] : memref<4x8x8xf32, #tpu.memory_space<vmem>>, vector<4x8x8xf32>
      tpu.vector_store %arg15[%c0_36, %c0_37, %c0_38], %44 {strides = array<i32>} : memref<4x8x8xf32, #tpu.memory_space<vmem>>, vector<4x8x8xf32>,
      %c0_39 = arith.constant 0 : index
      %c0_40 = arith.constant 0 : index
      %c0_41 = arith.constant 0 : index
      %46 = vector.load %arg13[%c0_39, %c0_40, %c0_41] : memref<4x8x1xf32, #tpu.memory_space<vmem>>, vector<4x8x1xf32>
      tpu.vector_store %arg13[%c0_39, %c0_40, %c0_41], %26 {strides = array<i32>} : memref<4x8x1xf32, #tpu.memory_space<vmem>>, vector<4x8x1xf32>,
    } else {
    }
    %c0_i32_3 = arith.constant 0 : i32
    %9 = arith.cmpi eq, %arg2, %c0_i32_3 : i32
    %10 = arith.extui %9 : i1 to i32
    %c0_i32_4 = arith.constant 0 : i32
    %11 = arith.cmpi ne, %10, %c0_i32_4 : i32
    scf.if %11 {
      %c0 = arith.constant 0 : index
      %c0_5 = arith.constant 0 : index
      %c0_6 = arith.constant 0 : index
      %12 = vector.load %arg14[%c0, %c0_5, %c0_6] : memref<4x8x1xf32, #tpu.memory_space<vmem>>, vector<4x8x1xf32>
      %13 = tpu.reciprocal %12 {approx = true} : vector<4x8x1xf32> -> vector<4x8x1xf32>
      %c0_7 = arith.constant 0 : index
      %c0_8 = arith.constant 0 : index
      %c0_9 = arith.constant 0 : index
      %14 = vector.load %arg15[%c0_7, %c0_8, %c0_9] : memref<4x8x8xf32, #tpu.memory_space<vmem>>, vector<1x8x8xf32>
      %15 = vector.shape_cast %14 : vector<1x8x8xf32> to vector<8x8xf32>
      %16 = vector.extract_strided_slice %13 {offsets = [0, 0, 0], sizes = [1, 8, 1], strides = [1, 1, 1]} : vector<4x8x1xf32> to vector<1x8x1xf32>
      %17 = vector.shape_cast %16 : vector<1x8x1xf32> to vector<8x1xf32>
      %18 = vector.broadcast %17 : vector<8x1xf32> to vector<8x8xf32>
      %19 = arith.mulf %15, %18 : vector<8x8xf32>
      %20 = arith.truncf %19 : vector<8x8xf32> to vector<8x8xbf16>
      %c0_10 = arith.constant 0 : index
      %c0_11 = arith.constant 0 : index
      %21 = vector.load %arg16[%c0_10, %c0_11] : memref<8x32xbf16, #tpu.memory_space<vmem>>, vector<8x8xbf16>
      tpu.vector_store %arg16[%c0_10, %c0_11], %20 {strides = array<i32>} : memref<8x32xbf16, #tpu.memory_space<vmem>>, vector<8x8xbf16>,
      %c1 = arith.constant 1 : index
      %c0_12 = arith.constant 0 : index
      %c0_13 = arith.constant 0 : index
      %22 = vector.load %arg15[%c1, %c0_12, %c0_13] : memref<4x8x8xf32, #tpu.memory_space<vmem>>, vector<1x8x8xf32>
      %23 = vector.shape_cast %22 : vector<1x8x8xf32> to vector<8x8xf32>
      %24 = vector.extract_strided_slice %13 {offsets = [1, 0, 0], sizes = [1, 8, 1], strides = [1, 1, 1]} : vector<4x8x1xf32> to vector<1x8x1xf32>
      %25 = vector.shape_cast %24 : vector<1x8x1xf32> to vector<8x1xf32>
      %26 = vector.broadcast %25 : vector<8x1xf32> to vector<8x8xf32>
      %27 = arith.mulf %23, %26 : vector<8x8xf32>
      %28 = arith.truncf %27 : vector<8x8xf32> to vector<8x8xbf16>
      %c0_14 = arith.constant 0 : index
      %c8 = arith.constant 8 : index
      %29 = vector.load %arg16[%c0_14, %c8] : memref<8x32xbf16, #tpu.memory_space<vmem>>, vector<8x8xbf16>
      tpu.vector_store %arg16[%c0_14, %c8], %28 {strides = array<i32>} : memref<8x32xbf16, #tpu.memory_space<vmem>>, vector<8x8xbf16>,
      %c2 = arith.constant 2 : index
      %c0_15 = arith.constant 0 : index
      %c0_16 = arith.constant 0 : index
      %30 = vector.load %arg15[%c2, %c0_15, %c0_16] : memref<4x8x8xf32, #tpu.memory_space<vmem>>, vector<1x8x8xf32>
      %31 = vector.shape_cast %30 : vector<1x8x8xf32> to vector<8x8xf32>
      %32 = vector.extract_strided_slice %13 {offsets = [2, 0, 0], sizes = [1, 8, 1], strides = [1, 1, 1]} : vector<4x8x1xf32> to vector<1x8x1xf32>
      %33 = vector.shape_cast %32 : vector<1x8x1xf32> to vector<8x1xf32>
      %34 = vector.broadcast %33 : vector<8x1xf32> to vector<8x8xf32>
      %35 = arith.mulf %31, %34 : vector<8x8xf32>
      %36 = arith.truncf %35 : vector<8x8xf32> to vector<8x8xbf16>
      %c0_17 = arith.constant 0 : index
      %c16 = arith.constant 16 : index
      %37 = vector.load %arg16[%c0_17, %c16] : memref<8x32xbf16, #tpu.memory_space<vmem>>, vector<8x8xbf16>
      tpu.vector_store %arg16[%c0_17, %c16], %36 {strides = array<i32>} : memref<8x32xbf16, #tpu.memory_space<vmem>>, vector<8x8xbf16>,
      %c3 = arith.constant 3 : index
      %c0_18 = arith.constant 0 : index
      %c0_19 = arith.constant 0 : index
      %38 = vector.load %arg15[%c3, %c0_18, %c0_19] : memref<4x8x8xf32, #tpu.memory_space<vmem>>, vector<1x8x8xf32>
      %39 = vector.shape_cast %38 : vector<1x8x8xf32> to vector<8x8xf32>
      %40 = vector.extract_strided_slice %13 {offsets = [3, 0, 0], sizes = [1, 8, 1], strides = [1, 1, 1]} : vector<4x8x1xf32> to vector<1x8x1xf32>
      %41 = vector.shape_cast %40 : vector<1x8x1xf32> to vector<8x1xf32>
      %42 = vector.broadcast %41 : vector<8x1xf32> to vector<8x8xf32>
      %43 = arith.mulf %39, %42 : vector<8x8xf32>
      %44 = arith.truncf %43 : vector<8x8xf32> to vector<8x8xbf16>
      %c0_20 = arith.constant 0 : index
      %c24 = arith.constant 24 : index
      %45 = vector.load %arg16[%c0_20, %c24] : memref<8x32xbf16, #tpu.memory_space<vmem>>, vector<8x8xbf16>
      tpu.vector_store %arg16[%c0_20, %c24], %44 {strides = array<i32>} : memref<8x32xbf16, #tpu.memory_space<vmem>>, vector<8x8xbf16>,
      %c0_21 = arith.constant 0 : index
      %c0_22 = arith.constant 0 : index
      %46 = vector.load %arg16[%c0_21, %c0_22] : memref<8x32xbf16, #tpu.memory_space<vmem>>, vector<8x32xbf16>
      %c0_23 = arith.constant 0 : index
      %c0_24 = arith.constant 0 : index
      %47 = vector.load %arg8[%c0_23, %c0_24] : memref<32x32xbf16, #tpu.memory_space<vmem>>, vector<32x32xbf16>
      %cst = arith.constant dense<0.000000e+00> : vector<8x32xf32>
      %48 = tpu.matmul %46, %47, %cst {dimension_numbers = #tpu.dot_dimension_numbers<[1], [0], [0], [1], [0, 0, 1, 1], [], []>} : vector<8x32xbf16>, vector<32x32xbf16>, vector<8x32xf32> -> vector<8x32xf32>
      %c0_25 = arith.constant 0 : index
      %c0_26 = arith.constant 0 : index
      %49 = vector.load %arg9[%c0_25, %c0_26] : memref<1x32xf32, #tpu.memory_space<vmem>>, vector<1x32xf32>
      %50 = vector.broadcast %49 : vector<1x32xf32> to vector<8x32xf32>
      %51 = arith.addf %48, %50 : vector<8x32xf32>
      %c0_27 = arith.constant 0 : index
      %c0_28 = arith.constant 0 : index
      %c0_29 = arith.constant 0 : index
      %52 = vector.load %arg3[%c0_27, %c0_28, %c0_29] : memref<1x8x32xf32, #tpu.memory_space<vmem>>, vector<1x8x32xf32>
      %53 = vector.shape_cast %52 : vector<1x8x32xf32> to vector<8x32xf32>
      %54 = arith.addf %53, %51 : vector<8x32xf32>
      %c0_30 = arith.constant 0 : index
      %c0_31 = arith.constant 0 : index
      %55 = vector.load %arg10[%c0_30, %c0_31] : memref<1x32xf32, #tpu.memory_space<vmem>>, vector<1x32xf32>
      %c0_32 = arith.constant 0 : index
      %c0_33 = arith.constant 0 : index
      %56 = vector.load %arg11[%c0_32, %c0_33] : memref<1x32xf32, #tpu.memory_space<vmem>>, vector<1x32xf32>
      %cst_34 = arith.constant dense<0.000000e+00> : vector<8xf32>
      %57 = vector.multi_reduction <add>, %54, %cst_34 [1] : vector<8x32xf32> to vector<8xf32>
      %58 = vector.shape_cast %57 : vector<8xf32> to vector<8x1xf32>
      %cst_35 = arith.constant 3.200000e+01 : f32
      %59 = vector.broadcast %cst_35 : f32 to vector<8x1xf32>
      %60 = arith.divf %58, %59 : vector<8x1xf32>
      %61 = vector.broadcast %60 : vector<8x1xf32> to vector<8x32xf32>
      %62 = arith.subf %54, %61 : vector<8x32xf32>
      %63 = arith.mulf %62, %62 : vector<8x32xf32>
      %cst_36 = arith.constant dense<0.000000e+00> : vector<8xf32>
      %64 = vector.multi_reduction <add>, %63, %cst_36 [1] : vector<8x32xf32> to vector<8xf32>
      %65 = vector.shape_cast %64 : vector<8xf32> to vector<8x1xf32>
      %cst_37 = arith.constant 3.200000e+01 : f32
      %66 = vector.broadcast %cst_37 : f32 to vector<8x1xf32>
      %67 = arith.divf %65, %66 : vector<8x1xf32>
      %68 = vector.broadcast %60 : vector<8x1xf32> to vector<8x32xf32>
      %69 = arith.subf %54, %68 : vector<8x32xf32>
      %cst_38 = arith.constant 9.99999974E-6 : f32
      %70 = vector.broadcast %cst_38 : f32 to vector<8x1xf32>
      %71 = arith.addf %67, %70 : vector<8x1xf32>
      %72 = math.rsqrt %71 : vector<8x1xf32>
      %73 = vector.broadcast %72 : vector<8x1xf32> to vector<8x32xf32>
      %74 = arith.mulf %69, %73 : vector<8x32xf32>
      %75 = vector.broadcast %55 : vector<1x32xf32> to vector<8x32xf32>
      %76 = arith.mulf %74, %75 : vector<8x32xf32>
      %77 = vector.broadcast %56 : vector<1x32xf32> to vector<8x32xf32>
      %78 = arith.addf %76, %77 : vector<8x32xf32>
      %c0_39 = arith.constant 0 : index
      %c0_40 = arith.constant 0 : index
      %c0_41 = arith.constant 0 : index
      %79 = vector.load %arg12[%c0_39, %c0_40, %c0_41] : memref<1x8x32xf32, #tpu.memory_space<vmem>>, vector<1x8x32xf32>
      %80 = vector.shape_cast %79 : vector<1x8x32xf32> to vector<8x32xf32>
      %81 = vector.shape_cast %78 : vector<8x32xf32> to vector<1x8x32xf32>
      tpu.vector_store %arg12[%c0_39, %c0_40, %c0_41], %81 {strides = array<i32>} : memref<1x8x32xf32, #tpu.memory_space<vmem>>, vector<1x8x32xf32>,
    } else {
    }
    return
  }
  func.func @transform_0(%arg0: i32, %arg1: i32, %arg2: i32) -> (i32, i32, i32) {
    %c0_i32 = arith.constant 0 : i32
    %c0_i32_0 = arith.constant 0 : i32
    return %arg0, %arg1, %c0_i32 : i32, i32, i32
  }
  func.func @transform_1(%arg0: i32, %arg1: i32, %arg2: i32) -> (i32, i32, i32, i32) {
    %c0_i32 = arith.constant 0 : i32
    %c0_i32_0 = arith.constant 0 : i32
    %c0_i32_1 = arith.constant 0 : i32
    return %arg0, %c0_i32, %arg1, %c0_i32_0 : i32, i32, i32, i32
  }
  func.func @transform_2(%arg0: i32, %arg1: i32, %arg2: i32) -> (i32, i32, i32, i32) {
    %c0_i32 = arith.constant 0 : i32
    %c0_i32_0 = arith.constant 0 : i32
    %c0_i32_1 = arith.constant 0 : i32
    return %arg0, %c0_i32, %arg2, %c0_i32_0 : i32, i32, i32, i32
  }
  func.func @transform_3(%arg0: i32, %arg1: i32, %arg2: i32) -> (i32, i32, i32, i32) {
    %c0_i32 = arith.constant 0 : i32
    %c0_i32_0 = arith.constant 0 : i32
    %c0_i32_1 = arith.constant 0 : i32
    return %arg0, %c0_i32, %arg2, %c0_i32_0 : i32, i32, i32, i32
  }
  func.func @transform_4(%arg0: i32, %arg1: i32, %arg2: i32) -> (i32, i32) {
    %c0_i32 = arith.constant 0 : i32
    return %arg1, %arg2 : i32, i32
  }
  func.func @transform_5(%arg0: i32, %arg1: i32, %arg2: i32) -> (i32, i32) {
    %c0_i32 = arith.constant 0 : i32
    %c0_i32_0 = arith.constant 0 : i32
    %c0_i32_1 = arith.constant 0 : i32
    return %c0_i32, %c0_i32_0 : i32, i32
  }
  func.func @transform_6(%arg0: i32, %arg1: i32, %arg2: i32) -> (i32, i32) {
    %c0_i32 = arith.constant 0 : i32
    %c0_i32_0 = arith.constant 0 : i32
    %c0_i32_1 = arith.constant 0 : i32
    return %c0_i32, %c0_i32_0 : i32, i32
  }
  func.func @transform_7(%arg0: i32, %arg1: i32, %arg2: i32) -> (i32, i32) {
    %c0_i32 = arith.constant 0 : i32
    %c0_i32_0 = arith.constant 0 : i32
    %c0_i32_1 = arith.constant 0 : i32
    return %c0_i32, %c0_i32_0 : i32, i32
  }
  func.func @transform_8(%arg0: i32, %arg1: i32, %arg2: i32) -> (i32, i32) {
    %c0_i32 = arith.constant 0 : i32
    %c0_i32_0 = arith.constant 0 : i32
    %c0_i32_1 = arith.constant 0 : i32
    return %c0_i32, %c0_i32_0 : i32, i32
  }
  func.func @transform_9(%arg0: i32, %arg1: i32, %arg2: i32) -> (i32, i32, i32) {
    %c0_i32 = arith.constant 0 : i32
    %c0_i32_0 = arith.constant 0 : i32
    return %arg0, %arg1, %c0_i32 : i32, i32, i32
  }
}

</mosaic_0001>

<llo_original>
// kernel: tpu_custom_call.1
$region0: #{tpu_custom_call.1}
  #allocation0 [shape = 'u32[]', space=smem, size = 0x4, offset = 0x4, fixed_abs, tag = 'smem constant byte address 0x4 - core index']
  #allocation1 [shape = 'u32[144,128]{1,0:T(1,128)}', space=vmem, size = 0x12000, scoped, tag = 'internal scratch']
  #allocation2 [shape = 'f32[4,8,1]{2,1,0:T(8,128)}', space=vmem, size = 0x4000, scoped, tag = 'scratch operand']
  #allocation3 [shape = 'f32[4,8,1]{2,1,0:T(8,128)}', space=vmem, size = 0x4000, scoped, tag = 'scratch operand']
  #allocation4 [shape = 'f32[4,8,8]{2,1,0:T(8,128)}', space=vmem, size = 0x4000, scoped, tag = 'scratch operand']
  #allocation5 [shape = 'bf16[8,32]{1,0:T(8,128)(2,1)}', space=vmem, size = 0x800, scoped, tag = 'scratch operand']
  %s0 = inlined_call_operand.hbm [shape: f32[2,8,32], index: 0, kind: input, shape index: {}]
  %s1 = inlined_call_operand.hbm [shape: bf16[2,4,8,8], index: 1, kind: input, shape index: {}]
  %s2 = inlined_call_operand.hbm [shape: bf16[2,4,8,8], index: 2, kind: input, shape index: {}]
  %s3 = inlined_call_operand.hbm [shape: bf16[2,4,8,8], index: 3, kind: input, shape index: {}]
  %s4 = inlined_call_operand.hbm [shape: f32[8,8], index: 4, kind: input, shape index: {}]
  %s5 = inlined_call_operand.vmem [shape: bf16[32,32], index: 5, kind: input, shape index: {}]
  %s6 = inlined_call_operand.vmem [shape: f32[1,32], index: 6, kind: input, shape index: {}]
  %s7 = inlined_call_operand.vmem [shape: f32[1,32], index: 7, kind: input, shape index: {}]
  %s8 = inlined_call_operand.vmem [shape: f32[1,32], index: 8, kind: input, shape index: {}]
  %s9 = inlined_call_operand.hbm [shape: f32[2,8,32], index: 9, kind: output, shape index: {}]
  %s10 = sld [smem:[#allocation0]]
  $region101: #{tpu_custom_call.1} parent=0
    _
  %s12 = ssub.s32 1, %s10
  %s13 = scalar_select 0, %s12, %s10
  $region1: #{tpu_custom_call.1} parent=0
    #allocation6 [shape = 'u8[8192]{0}', space=vmem, size = 0x2000, scoped, tag = 'input window, operand 0']
    #allocation7 [shape = 's32[2]{0}', space=sflag, size = 0x8, scoped, tag = 'scoped memory for tpu_custom_call.1']
    #allocation8 [shape = 's32[2]{0}', space=sflag, size = 0x8, scoped, tag = 'scoped memory for tpu_custom_call.1']
    #allocation9 [shape = 'u8[16384]{0}', space=vmem, size = 0x4000, scoped, tag = 'input window, operand 1']
    #allocation10 [shape = 's32[2]{0}', space=sflag, size = 0x8, scoped, tag = 'scoped memory for tpu_custom_call.1']
    #allocation11 [shape = 'u8[16384]{0}', space=vmem, size = 0x4000, scoped, tag = 'input window, operand 2']
    #allocation12 [shape = 'u8[16384]{0}', space=vmem, size = 0x4000, scoped, tag = 'input window, operand 3']
    #allocation13 [shape = 's32[2]{0}', space=sflag, size = 0x8, scoped, tag = 'scoped memory for tpu_custom_call.1']
    #allocation14 [shape = 'u8[4096]{0}', space=vmem, size = 0x1000, scoped, tag = 'input window, operand 4, single buffered']
    #allocation15 [shape = 'u8[8192]{0}', space=vmem, size = 0x2000, scoped, tag = 'output window, operand 0']
    %14 = vsyncpa [#allocation7], 0
    %s15 = scalar_lea.sflag [#allocation7], 1
    %16 = vsyncpa %s15, 0
    %17 = vsyncpa [#allocation10], 0
    %s18 = scalar_lea.sflag [#allocation10], 1
    %19 = vsyncpa %s18, 0
    %20 = vsyncpa [#allocation13], 0
    %s21 = scalar_lea.sflag [#allocation13], 1
    %22 = vsyncpa %s21, 0
    %23 = vsyncpa [#allocation8], 0
    %s24 = scalar_lea.sflag [#allocation8], 1
    %25 = vsyncpa %s24, 0
    loop: start=0, step=1, limit=4
    $region2: #{tpu_custom_call.1} parent=1 // loop_pre_header
      _
    $region3: #{tpu_custom_call.1} parent=1 // loop_header
      %s27 = sphi 0, %s31
      %p28 = scmp.ge.s32.totalorder %s27, 4
      %s34 = sphi 0, %s53
      %s35 = sphi 0, %s49
      %s36 = sphi 0, %s45
      %s37 = sphi 0, %s34
      %s38 = sphi 0, %s35
      %s39 = sphi 0, %s36
      %s40 = sphi 0, %s37
      %s41 = sphi 0, %s38
      %s42 = sphi 0, %s39
      %s58 = sphi 0, %s60
      %s61 = sphi 0, %s58
      %s62 = sphi 0, %s61
      %s78 = sphi 0, %s62
      %s86 = sphi 0, %s88
      %s89 = sphi 0, %s86
      %s90 = sphi 0, %s89
      %s106 = sphi 0, %s90
      %s114 = sphi 0, %s116
      %s117 = sphi 0, %s114
      %s118 = sphi 0, %s117
      %s134 = sphi 0, %s118
      %s142 = sphi 0, %s144
      %s145 = sphi 0, %s142
      %s146 = sphi 0, %s145
      %s162 = sphi 0, %s146
      %s170 = sphi 0, %s172
      %s173 = sphi 0, %s170
      %s174 = sphi 0, %s173
      %s190 = sphi 0, %s174
      %s194 = sphi 0, %s194
      %s196 = sphi 0, %s194
      %s197 = sphi 0, %s196
      %s211 = sphi 0, %s197
      %s215 = sphi 0, %s215
      %s217 = sphi 0, %s215
      %s218 = sphi 0, %s217
      %s232 = sphi 0, %s218
      %s236 = sphi 0, %s236
      %s238 = sphi 0, %s236
      %s239 = sphi 0, %s238
      %s253 = sphi 0, %s239
      %s257 = sphi 0, %s257
      %s259 = sphi 0, %s257
      %s260 = sphi 0, %s259
      %s274 = sphi 0, %s260
      %s282 = sphi 0, %s284
      %s285 = sphi 0, %s282
      %s286 = sphi 0, %s285
      %s302 = sphi 0, %s286
    $region4: #{tpu_custom_call.1} parent=1 // loop_header_branch
      %30 = sbr.rel (%p28) target = $region8
    $region5: #{tpu_custom_call.1} parent=1 // loop_body
      %s32 = ssub.s32 %s27, 1
      %s33 = ssub.s32 %s27, 2
      %s43 = sadd.s32 1, %s36
      %p44 = scmp.ge.s32.totalorder %s43, 1
      %s45 = scalar_select %p44, 0, %s43
      %s46 = sadd.s32 1, %s35
      %s47 = scalar_select %p44, %s46, %s35
      %p48 = scmp.ge.s32.totalorder %s47, 1
      %s49 = scalar_select %p48, 0, %s47
      %s50 = sadd.s32 1, %s34
      %s51 = scalar_select %p48, %s50, %s34
      %p52 = scmp.ge.s32.totalorder %s51, 2
      %s53 = scalar_select %p52, 0, %s51
      %s54 = ssub.s32 %s34, %s53
      %s55 = ssub.s32 %s35, %s49
      %s56 = sor.u32 %s54, %s55
      %p57 = scmp.eq.s32.totalorder %s56, 0
      %s59 = sadd.s32 %s58, 1
      %s60 = scalar_select %p57, %s58, %s59
      %p63 = pneg %p57
      %p64 = scmp.eq.s32.totalorder %s27, 1
      %p65 = por %p63, %p64
      %p66 = scmp.ne.s32.totalorder %s58, %s61
      %p67 = scmp.eq.s32.totalorder %s27, 0
      %p68 = por %p66, %p67
      %p69 = scmp.ne.s32.totalorder %s58, %s61
      %p70 = scmp.eq.s32.totalorder %s32, 1
      %p71 = por %p69, %p70
      %p72 = scmp.ne.s32.totalorder %s61, %s62
      %p73 = scmp.eq.s32.totalorder %s32, 0
      %p74 = por %p72, %p73
      %p75 = scmp.ne.s32.totalorder %s61, %s62
      %p76 = scmp.eq.s32.totalorder %s33, 1
      %p77 = por %p75, %p76
      %p79 = scmp.ne.s32.totalorder %s62, %s78
      %p80 = scmp.eq.s32.totalorder %s33, 0
      %p81 = por %p79, %p80
      %s82 = ssub.s32 %s34, %s53
      %s83 = ssub.s32 %s35, %s49
      %s84 = sor.u32 %s82, %s83
      %p85 = scmp.eq.s32.totalorder %s84, 0
      %s87 = sadd.s32 %s86, 1
      %s88 = scalar_select %p85, %s86, %s87
      %p91 = pneg %p85
      %p92 = scmp.eq.s32.totalorder %s27, 1
      %p93 = por %p91, %p92
      %p94 = scmp.ne.s32.totalorder %s86, %s89
      %p95 = scmp.eq.s32.totalorder %s27, 0
      %p96 = por %p94, %p95
      %p97 = scmp.ne.s32.totalorder %s86, %s89
      %p98 = scmp.eq.s32.totalorder %s32, 1
      %p99 = por %p97, %p98
      %p100 = scmp.ne.s32.totalorder %s89, %s90
      %p101 = scmp.eq.s32.totalorder %s32, 0
      %p102 = por %p100, %p101
      %p103 = scmp.ne.s32.totalorder %s89, %s90
      %p104 = scmp.eq.s32.totalorder %s33, 1
      %p105 = por %p103, %p104
      %p107 = scmp.ne.s32.totalorder %s90, %s106
      %p108 = scmp.eq.s32.totalorder %s33, 0
      %p109 = por %p107, %p108
      %s110 = ssub.s32 %s34, %s53
      %s111 = ssub.s32 %s36, %s45
      %s112 = sor.u32 %s110, %s111
      %p113 = scmp.eq.s32.totalorder %s112, 0
      %s115 = sadd.s32 %s114, 1
      %s116 = scalar_select %p113, %s114, %s115
      %p119 = pneg %p113
      %p120 = scmp.eq.s32.totalorder %s27, 1
      %p121 = por %p119, %p120
      %p122 = scmp.ne.s32.totalorder %s114, %s117
      %p123 = scmp.eq.s32.totalorder %s27, 0
      %p124 = por %p122, %p123
      %p125 = scmp.ne.s32.totalorder %s114, %s117
      %p126 = scmp.eq.s32.totalorder %s32, 1
      %p127 = por %p125, %p126
      %p128 = scmp.ne.s32.totalorder %s117, %s118
      %p129 = scmp.eq.s32.totalorder %s32, 0
      %p130 = por %p128, %p129
      %p131 = scmp.ne.s32.totalorder %s117, %s118
      %p132 = scmp.eq.s32.totalorder %s33, 1
      %p133 = por %p131, %p132
      %p135 = scmp.ne.s32.totalorder %s118, %s134
      %p136 = scmp.eq.s32.totalorder %s33, 0
      %p137 = por %p135, %p136
      %s138 = ssub.s32 %s34, %s53
      %s139 = ssub.s32 %s36, %s45
      %s140 = sor.u32 %s138, %s139
      %p141 = scmp.eq.s32.totalorder %s140, 0
      %s143 = sadd.s32 %s142, 1
      %s144 = scalar_select %p141, %s142, %s143
      %p147 = pneg %p141
      %p148 = scmp.eq.s32.totalorder %s27, 1
      %p149 = por %p147, %p148
      %p150 = scmp.ne.s32.totalorder %s142, %s145
      %p151 = scmp.eq.s32.totalorder %s27, 0
      %p152 = por %p150, %p151
      %p153 = scmp.ne.s32.totalorder %s142, %s145
      %p154 = scmp.eq.s32.totalorder %s32, 1
      %p155 = por %p153, %p154
      %p156 = scmp.ne.s32.totalorder %s145, %s146
      %p157 = scmp.eq.s32.totalorder %s32, 0
      %p158 = por %p156, %p157
      %p159 = scmp.ne.s32.totalorder %s145, %s146
      %p160 = scmp.eq.s32.totalorder %s33, 1
      %p161 = por %p159, %p160
      %p163 = scmp.ne.s32.totalorder %s146, %s162
      %p164 = scmp.eq.s32.totalorder %s33, 0
      %p165 = por %p163, %p164
      %s166 = ssub.s32 %s35, %s49
      %s167 = ssub.s32 %s36, %s45
      %s168 = sor.u32 %s166, %s167
      %p169 = scmp.eq.s32.totalorder %s168, 0
      %s171 = sadd.s32 %s170, 1
      %s172 = scalar_select %p169, %s170, %s171
      %p175 = pneg %p169
      %p176 = scmp.eq.s32.totalorder %s27, 1
      %p177 = por %p175, %p176
      %p178 = scmp.ne.s32.totalorder %s170, %s173
      %p179 = scmp.eq.s32.totalorder %s27, 0
      %p180 = por %p178, %p179
      %p181 = scmp.ne.s32.totalorder %s170, %s173
      %p182 = scmp.eq.s32.totalorder %s32, 1
      %p183 = por %p181, %p182
      %p184 = scmp.ne.s32.totalorder %s173, %s174
      %p185 = scmp.eq.s32.totalorder %s32, 0
      %p186 = por %p184, %p185
      %p187 = scmp.ne.s32.totalorder %s173, %s174
      %p188 = scmp.eq.s32.totalorder %s33, 1
      %p189 = por %p187, %p188
      %p191 = scmp.ne.s32.totalorder %s174, %s190
      %p192 = scmp.eq.s32.totalorder %s33, 0
      %p193 = por %p191, %p192
      %s195 = sadd.s32 %s194, 1
      %p198 = scmp.eq.s32.totalorder %s27, 1
      %p199 = scmp.ne.s32.totalorder %s194, %s196
      %p200 = scmp.eq.s32.totalorder %s27, 0
      %p201 = por %p199, %p200
      %p202 = scmp.ne.s32.totalorder %s194, %s196
      %p203 = scmp.eq.s32.totalorder %s32, 1
      %p204 = por %p202, %p203
      %p205 = scmp.ne.s32.totalorder %s196, %s197
      %p206 = scmp.eq.s32.totalorder %s32, 0
      %p207 = por %p205, %p206
      %p208 = scmp.ne.s32.totalorder %s196, %s197
      %p209 = scmp.eq.s32.totalorder %s33, 1
      %p210 = por %p208, %p209
      %p212 = scmp.ne.s32.totalorder %s197, %s211
      %p213 = scmp.eq.s32.totalorder %s33, 0
      %p214 = por %p212, %p213
      %s216 = sadd.s32 %s215, 1
      %p219 = scmp.eq.s32.totalorder %s27, 1
      %p220 = scmp.ne.s32.totalorder %s215, %s217
      %p221 = scmp.eq.s32.totalorder %s27, 0
      %p222 = por %p220, %p221
      %p223 = scmp.ne.s32.totalorder %s215, %s217
      %p224 = scmp.eq.s32.totalorder %s32, 1
      %p225 = por %p223, %p224
      %p226 = scmp.ne.s32.totalorder %s217, %s218
      %p227 = scmp.eq.s32.totalorder %s32, 0
      %p228 = por %p226, %p227
      %p229 = scmp.ne.s32.totalorder %s217, %s218
      %p230 = scmp.eq.s32.totalorder %s33, 1
      %p231 = por %p229, %p230
      %p233 = scmp.ne.s32.totalorder %s218, %s232
      %p234 = scmp.eq.s32.totalorder %s33, 0
      %p235 = por %p233, %p234
      %s237 = sadd.s32 %s236, 1
      %p240 = scmp.eq.s32.totalorder %s27, 1
      %p241 = scmp.ne.s32.totalorder %s236, %s238
      %p242 = scmp.eq.s32.totalorder %s27, 0
      %p243 = por %p241, %p242
      %p244 = scmp.ne.s32.totalorder %s236, %s238
      %p245 = scmp.eq.s32.totalorder %s32, 1
      %p246 = por %p244, %p245
      %p247 = scmp.ne.s32.totalorder %s238, %s239
      %p248 = scmp.eq.s32.totalorder %s32, 0
      %p249 = por %p247, %p248
      %p250 = scmp.ne.s32.totalorder %s238, %s239
      %p251 = scmp.eq.s32.totalorder %s33, 1
      %p252 = por %p250, %p251
      %p254 = scmp.ne.s32.totalorder %s239, %s253
      %p255 = scmp.eq.s32.totalorder %s33, 0
      %p256 = por %p254, %p255
      %s258 = sadd.s32 %s257, 1
      %p261 = scmp.eq.s32.totalorder %s27, 1
      %p262 = scmp.ne.s32.totalorder %s257, %s259
      %p263 = scmp.eq.s32.totalorder %s27, 0
      %p264 = por %p262, %p263
      %p265 = scmp.ne.s32.totalorder %s257, %s259
      %p266 = scmp.eq.s32.totalorder %s32, 1
      %p267 = por %p265, %p266
      %p268 = scmp.ne.s32.totalorder %s259, %s260
      %p269 = scmp.eq.s32.totalorder %s32, 0
      %p270 = por %p268, %p269
      %p271 = scmp.ne.s32.totalorder %s259, %s260
      %p272 = scmp.eq.s32.totalorder %s33, 1
      %p273 = por %p271, %p272
      %p275 = scmp.ne.s32.totalorder %s260, %s274
      %p276 = scmp.eq.s32.totalorder %s33, 0
      %p277 = por %p275, %p276
      %s278 = ssub.s32 %s34, %s53
      %s279 = ssub.s32 %s35, %s49
      %s280 = sor.u32 %s278, %s279
      %p281 = scmp.eq.s32.totalorder %s280, 0
      %s283 = sadd.s32 %s282, 1
      %s284 = scalar_select %p281, %s282, %s283
      %p287 = pneg %p281
      %p288 = scmp.eq.s32.totalorder %s27, 1
      %p289 = por %p287, %p288
      %p290 = scmp.ne.s32.totalorder %s282, %s285
      %p291 = scmp.eq.s32.totalorder %s27, 0
      %p292 = por %p290, %p291
      %p293 = scmp.ne.s32.totalorder %s282, %s285
      %p294 = scmp.eq.s32.totalorder %s32, 1
      %p295 = por %p293, %p294
      %p296 = scmp.ne.s32.totalorder %s285, %s286
      %p297 = scmp.eq.s32.totalorder %s32, 0
      %p298 = por %p296, %p297
      %p299 = scmp.ne.s32.totalorder %s285, %s286
      %p300 = scmp.eq.s32.totalorder %s33, 1
      %p301 = por %p299, %p300
      %p303 = scmp.ne.s32.totalorder %s286, %s302
      %p304 = scmp.eq.s32.totalorder %s33, 0
      %p305 = por %p303, %p304
      %p306 = scmp.le.s32.totalorder 1, %s27
      %p307 = scmp.lt.s32.totalorder %s27, 3
      %p308 = pnand %p306, %p307
      %p309 = pneg %p308
      // Predicated region
      $region9: #{tpu_custom_call.1} parent=5 // pred_check
        _
      $region10: #{tpu_custom_call.1} parent=5 // pred_check_branch
        %311 = sbr.rel (%p308) target = $region12
      $region11: #{tpu_custom_call.1} parent=5 // pred_region
        %s312 = ssub.s32 %s27, 1
        // Predicated region
        $region13: #{tpu_custom_call.1} parent=11 // pred_check
          %p313 = pneg %p186
        $region14: #{tpu_custom_call.1} parent=11 // pred_check_branch
          %315 = sbr.rel (%p313) target = $region16
        $region15: #{tpu_custom_call.1} parent=11 // pred_region
          %s317 = ssub.s32 128, 128
          %318 = vsyncadd [#allocation13], %s317
          %s319 = sadd.s32 %s39, %s38
          %s320 = smul.addr %s319, 128
          %s321 = scalar_lea.hbm %s4, %s320
          %s323 = sshll.u32 [#allocation14], 4
          %s324 = int_to_ptr.vmem [resolvable:$true] %s323
          %326 = dma.hbm_to_vmem [thread:$0]  %s321, 128, %s324, [#allocation13]
        $region16: #{tpu_custom_call.1} parent=11 // pred_fallthru
          _
        // Predicated region
        $region17: #{tpu_custom_call.1} parent=11 // pred_check
          %p327 = pneg %p207
        $region18: #{tpu_custom_call.1} parent=11 // pred_check_branch
          %329 = sbr.rel (%p327) target = $region20
        $region19: #{tpu_custom_call.1} parent=11 // pred_region
          _
        $region20: #{tpu_custom_call.1} parent=11 // pred_fallthru
          _
        // Predicated region
        $region21: #{tpu_custom_call.1} parent=11 // pred_check
          %p330 = pneg %p228
        $region22: #{tpu_custom_call.1} parent=11 // pred_check_branch
          %332 = sbr.rel (%p330) target = $region24
        $region23: #{tpu_custom_call.1} parent=11 // pred_region
          _
        $region24: #{tpu_custom_call.1} parent=11 // pred_fallthru
          _
        // Predicated region
        $region25: #{tpu_custom_call.1} parent=11 // pred_check
          %p333 = pneg %p249
        $region26: #{tpu_custom_call.1} parent=11 // pred_check_branch
          %335 = sbr.rel (%p333) target = $region28
        $region27: #{tpu_custom_call.1} parent=11 // pred_region
          _
        $region28: #{tpu_custom_call.1} parent=11 // pred_fallthru
          _
        // Predicated region
        $region29: #{tpu_custom_call.1} parent=11 // pred_check
          %p336 = pneg %p270
        $region30: #{tpu_custom_call.1} parent=11 // pred_check_branch
          %338 = sbr.rel (%p336) target = $region32
        $region31: #{tpu_custom_call.1} parent=11 // pred_region
          _
        $region32: #{tpu_custom_call.1} parent=11 // pred_fallthru
          _
      $region12: #{tpu_custom_call.1} parent=5 // pred_fallthru
        _
      %p339 = scmp.lt.s32.totalorder %s27, 2
      // Predicated region
      $region33: #{tpu_custom_call.1} parent=5 // pred_check
        %p340 = pneg %p339
      $region34: #{tpu_custom_call.1} parent=5 // pred_check_branch
        %342 = sbr.rel (%p340) target = $region36
      $region35: #{tpu_custom_call.1} parent=5 // pred_region
        // Predicated region
        $region37: #{tpu_custom_call.1} parent=35 // pred_check
          %p343 = pneg %p68
        $region38: #{tpu_custom_call.1} parent=35 // pred_check_branch
          %345 = sbr.rel (%p343) target = $region40
        $region39: #{tpu_custom_call.1} parent=35 // pred_region
          %s346 = sand.u32 %s58, 1
          %s347 = scalar_lea.sflag [#allocation7], %s346
          %s348 = sand.u32 %s58, 1
          %s349 = smul.addr %s348, 8
          %s350 = scalar_lea.vmem [#allocation6], %s349
          %s352 = ssub.s32 128, 128
          %353 = vsyncadd %s347, %s352
          %s354 = sadd.s32 %s35, %s34
          %s355 = smul.addr %s354, 128
          %s356 = scalar_lea.hbm %s0, %s355
          %s358 = sshll.u32 %s350, 4
          %s359 = int_to_ptr.vmem [resolvable:$true] %s358
          %361 = dma.hbm_to_vmem [thread:$0]  %s356, 128, %s359, %s347
        $region40: #{tpu_custom_call.1} parent=35 // pred_fallthru
          _
        // Predicated region
        $region41: #{tpu_custom_call.1} parent=35 // pred_check
          %p362 = pneg %p96
        $region42: #{tpu_custom_call.1} parent=35 // pred_check_branch
          %364 = sbr.rel (%p362) target = $region44
        $region43: #{tpu_custom_call.1} parent=35 // pred_region
          %s365 = sand.u32 %s27, 1
          %s366 = scalar_lea.sflag [#allocation10], %s365
          %s367 = sand.u32 %s86, 1
          %s368 = smul.addr %s367, 16
          %s369 = scalar_lea.vmem [#allocation9], %s368
          %s371 = ssub.s32 256, 256
          %372 = vsyncadd %s366, %s371
          %s373 = smul.addr %s34, 4
          %s374 = sadd.s32 %s35, %s373
          %s375 = smul.addr %s374, 64
          %s376 = scalar_lea.hbm %s1, %s375
          %s377 = sshll.u32 %s369, 4
          %s378 = int_to_ptr.vmem [resolvable:$true] %s377
          %383 = dma.hbm_to_vmem [thread:$0]  %s376, 256, %s378, %s366, 64, 64, 4
        $region44: #{tpu_custom_call.1} parent=35 // pred_fallthru
          _
        // Predicated region
        $region45: #{tpu_custom_call.1} parent=35 // pred_check
          %p384 = pneg %p124
        $region46: #{tpu_custom_call.1} parent=35 // pred_check_branch
          %386 = sbr.rel (%p384) target = $region48
        $region47: #{tpu_custom_call.1} parent=35 // pred_region
          %s387 = sand.u32 %s27, 1
          %s388 = scalar_lea.sflag [#allocation10], %s387
          %s389 = sand.u32 %s114, 1
          %s390 = smul.addr %s389, 16
          %s391 = scalar_lea.vmem [#allocation11], %s390
          %s393 = ssub.s32 256, 256
          %394 = vsyncadd %s388, %s393
          %s395 = smul.addr %s34, 4
          %s396 = sadd.s32 %s36, %s395
          %s397 = smul.addr %s396, 64
          %s398 = scalar_lea.hbm %s2, %s397
          %s399 = sshll.u32 %s391, 4
          %s400 = int_to_ptr.vmem [resolvable:$true] %s399
          %405 = dma.hbm_to_vmem [thread:$0]  %s398, 256, %s400, %s388, 64, 64, 4
        $region48: #{tpu_custom_call.1} parent=35 // pred_fallthru
          _
        // Predicated region
        $region49: #{tpu_custom_call.1} parent=35 // pred_check
          %p406 = pneg %p152
        $region50: #{tpu_custom_call.1} parent=35 // pred_check_branch
          %408 = sbr.rel (%p406) target = $region52
        $region51: #{tpu_custom_call.1} parent=35 // pred_region
          %s409 = sand.u32 %s27, 1
          %s410 = scalar_lea.sflag [#allocation13], %s409
          %s411 = sand.u32 %s142, 1
          %s412 = smul.addr %s411, 16
          %s413 = scalar_lea.vmem [#allocation12], %s412
          %s415 = ssub.s32 256, 256
          %416 = vsyncadd %s410, %s415
          %s417 = smul.addr %s34, 4
          %s418 = sadd.s32 %s36, %s417
          %s419 = smul.addr %s418, 64
          %s420 = scalar_lea.hbm %s3, %s419
          %s421 = sshll.u32 %s413, 4
          %s422 = int_to_ptr.vmem [resolvable:$true] %s421
          %427 = dma.hbm_to_vmem [thread:$0]  %s420, 256, %s422, %s410, 64, 64, 4
        $region52: #{tpu_custom_call.1} parent=35 // pred_fallthru
          _
      $region36: #{tpu_custom_call.1} parent=5 // pred_fallthru
        _
      %p428 = scmp.le.s32.totalorder 1, %s27
      %p429 = scmp.lt.s32.totalorder %s27, 3
      %p430 = pnand %p428, %p429
      %p431 = pneg %p430
      // Predicated region
      $region53: #{tpu_custom_call.1} parent=5 // pred_check
        _
      $region54: #{tpu_custom_call.1} parent=5 // pred_check_branch
        %433 = sbr.rel (%p430) target = $region56
      $region55: #{tpu_custom_call.1} parent=5 // pred_region
        %s434 = ssub.s32 %s27, 1
        %s435 = sand.u32 %s61, 1
        %s436 = scalar_lea.sflag [#allocation7], %s435
        %s437 = sand.u32 %s61, 1
        %s438 = smul.addr %s437, 8
        %s439 = scalar_lea.vmem [#allocation6], %s438
        // Predicated region
        $region57: #{tpu_custom_call.1} parent=55 // pred_check
          %p440 = pneg %p74
        $region58: #{tpu_custom_call.1} parent=55 // pred_check_branch
          %442 = sbr.rel (%p440) target = $region60
        $region59: #{tpu_custom_call.1} parent=55 // pred_region
          %443 = dma.done %s436, 128
        $region60: #{tpu_custom_call.1} parent=55 // pred_fallthru
          _
        %s444 = sand.u32 %s32, 1
        %s445 = scalar_lea.sflag [#allocation10], %s444
        %s446 = sand.u32 %s89, 1
        %s447 = smul.addr %s446, 16
        %s448 = scalar_lea.vmem [#allocation9], %s447
        // Predicated region
        $region61: #{tpu_custom_call.1} parent=55 // pred_check
          %p449 = pneg %p102
        $region62: #{tpu_custom_call.1} parent=55 // pred_check_branch
          %451 = sbr.rel (%p449) target = $region64
        $region63: #{tpu_custom_call.1} parent=55 // pred_region
          %452 = dma.done %s445, 256
        $region64: #{tpu_custom_call.1} parent=55 // pred_fallthru
          _
        %s453 = sand.u32 %s32, 1
        %s454 = scalar_lea.sflag [#allocation10], %s453
        %s455 = sand.u32 %s117, 1
        %s456 = smul.addr %s455, 16
        %s457 = scalar_lea.vmem [#allocation11], %s456
        // Predicated region
        $region65: #{tpu_custom_call.1} parent=55 // pred_check
          %p458 = pneg %p130
        $region66: #{tpu_custom_call.1} parent=55 // pred_check_branch
          %460 = sbr.rel (%p458) target = $region68
        $region67: #{tpu_custom_call.1} parent=55 // pred_region
          %461 = dma.done %s454, 256
        $region68: #{tpu_custom_call.1} parent=55 // pred_fallthru
          _
        %s462 = sand.u32 %s32, 1
        %s463 = scalar_lea.sflag [#allocation13], %s462
        %s464 = sand.u32 %s145, 1
        %s465 = smul.addr %s464, 16
        %s466 = scalar_lea.vmem [#allocation12], %s465
        // Predicated region
        $region69: #{tpu_custom_call.1} parent=55 // pred_check
          %p467 = pneg %p158
        $region70: #{tpu_custom_call.1} parent=55 // pred_check_branch
          %469 = sbr.rel (%p467) target = $region72
        $region71: #{tpu_custom_call.1} parent=55 // pred_region
          %470 = dma.done %s463, 256
        $region72: #{tpu_custom_call.1} parent=55 // pred_fallthru
          _
        // Predicated region
        $region73: #{tpu_custom_call.1} parent=55 // pred_check
          %p471 = pneg %p186
        $region74: #{tpu_custom_call.1} parent=55 // pred_check_branch
          %473 = sbr.rel (%p471) target = $region76
        $region75: #{tpu_custom_call.1} parent=55 // pred_region
          %474 = dma.done [#allocation13], 128
        $region76: #{tpu_custom_call.1} parent=55 // pred_fallthru
          _
        %s475 = sand.u32 %s61, 1
        %s476 = scalar_lea.sflag [#allocation7], %s475
        %s477 = sand.u32 %s61, 1
        %s478 = smul.addr %s477, 8
        %s479 = scalar_lea.vmem [#allocation6], %s478
        %p480 = pneg %p74
        %p481 = pneg %p71
        %s482 = sand.u32 %s32, 1
        %s483 = scalar_lea.sflag [#allocation10], %s482
        %s484 = sand.u32 %s89, 1
        %s485 = smul.addr %s484, 16
        %s486 = scalar_lea.vmem [#allocation9], %s485
        %p487 = pneg %p102
        %p488 = pneg %p99
        %s489 = sand.u32 %s32, 1
        %s490 = scalar_lea.sflag [#allocation10], %s489
        %s491 = sand.u32 %s117, 1
        %s492 = smul.addr %s491, 16
        %s493 = scalar_lea.vmem [#allocation11], %s492
        %p494 = pneg %p130
        %p495 = pneg %p127
        %s496 = sand.u32 %s32, 1
        %s497 = scalar_lea.sflag [#allocation13], %s496
        %s498 = sand.u32 %s145, 1
        %s499 = smul.addr %s498, 16
        %s500 = scalar_lea.vmem [#allocation12], %s499
        %p501 = pneg %p158
        %p502 = pneg %p155
        %p503 = pneg %p186
        %p504 = pneg %p183
        %p505 = pneg %p207
        %p506 = pneg %p204
        %p507 = pneg %p228
        %p508 = pneg %p225
        %p509 = pneg %p249
        %p510 = pneg %p246
        %p511 = pneg %p270
        %p512 = pneg %p267
        %p513 = pneg %p298
        %p514 = pneg %p295
        %s515 = sand.u32 %s285, 1
        %s516 = scalar_lea.sflag [#allocation8], %s515
        %s517 = sand.u32 %s285, 1
        %s518 = smul.addr %s517, 8
        %s519 = scalar_lea.vmem [#allocation15], %s518
        %p521 = scmp.eq.s32.totalorder %s39, 0
        // Predicated region
        $region77: #{tpu_custom_call.1} parent=55 // pred_check
          %p522 = pneg %p521
        $region78: #{tpu_custom_call.1} parent=55 // pred_check_branch
          %524 = sbr.rel (%p522) target = $region80
        $region79: #{tpu_custom_call.1} parent=55 // pred_region
          %vm525 = vcmask 7168
          %526 = vst.msk [vmem:[#allocation2] sm:$0xff] %vm525, -inf
          %527 = vst.msk [vmem:[#allocation2 + $0x8] sm:$0xff] %vm525, -inf
          %528 = vst.msk [vmem:[#allocation2 + $0x10] sm:$0xff] %vm525, -inf
          %529 = vst.msk [vmem:[#allocation2 + $0x18] sm:$0xff] %vm525, -inf
          %530 = vst.msk [vmem:[#allocation3] sm:$0xff] %vm525, 0.0
          %531 = vst.msk [vmem:[#allocation3 + $0x8] sm:$0xff] %vm525, 0.0
          %532 = vst.msk [vmem:[#allocation3 + $0x10] sm:$0xff] %vm525, 0.0
          %533 = vst.msk [vmem:[#allocation3 + $0x18] sm:$0xff] %vm525, 0.0
          %vm534 = vcmask 64512
          %535 = vst.msk [vmem:[#allocation4] sm:$0xff] %vm534, 0.0
          %536 = vst.msk [vmem:[#allocation4 + $0x8] sm:$0xff] %vm534, 0.0
          %537 = vst.msk [vmem:[#allocation4 + $0x10] sm:$0xff] %vm534, 0.0
          %538 = vst.msk [vmem:[#allocation4 + $0x18] sm:$0xff] %vm534, 0.0
        $region80: #{tpu_custom_call.1} parent=55 // pred_fallthru
          _
        %s539 = smul.u32 %s39, 8
        %s540 = sadd.s32 %s38, 1
        %s541 = smul.u32 %s540, 8
        %p542 = scmp.lt.s32.totalorder %s539, %s541
        // Predicated region
        $region81: #{tpu_custom_call.1} parent=55 // pred_check
          %p543 = pneg %p542
        $region82: #{tpu_custom_call.1} parent=55 // pred_check_branch
          %545 = sbr.rel (%p543) target = $region84
        $region83: #{tpu_custom_call.1} parent=55 // pred_region
          %v546 = vld [vmem:[%s448] sm:$0xf]
          %v547 = vld [vmem:[%s448 + $0x4] sm:$0xf]
          %v548 = vld [vmem:[%s448 + $0x8] sm:$0xf]
          %v549 = vld [vmem:[%s448 + $0xc] sm:$0xf]
          %v550 = vld [vmem:[%s457] sm:$0xf]
          %v551 = vld [vmem:[%s457 + $0x4] sm:$0xf]
          %v552 = vld [vmem:[%s457 + $0x8] sm:$0xf]
          %v553 = vld [vmem:[%s457 + $0xc] sm:$0xf]
          %v554 = vld [vmem:[%s466] sm:$0xf]
          %v555 = vld [vmem:[%s466 + $0x4] sm:$0xf]
          %v556 = vld [vmem:[%s466 + $0x8] sm:$0xf]
          %v557 = vld [vmem:[%s466 + $0xc] sm:$0xf]
          %v558 = vld [vmem:[#allocation14] sm:$0xff]
          %vm559 = vcmask 64512
          %v561 = vsel %vm559, %v546, 0
          %v564 = vsel %vm559, %v550, 0
          %566 = vmatprep.subr.bf16.mxu0 0
          %567 = vmatpush1.bf16.xpose.msra.mxu0 %v564
          %568 = vmatprep.subr.bf16.mxu0 0
          %569 = vmatpush1.bf16.xpose.msra.mxu0 0
          %570 = vmatprep.subr.bf16.mxu0 0
          %571 = vmatpush1.bf16.xpose.msra.mxu0 0
          %572 = vmatprep.subr.bf16.mxu0 0
          %573 = vmatpush1.bf16.xpose.msra.mxu0 0
          %574 = vmatprep.subr.bf16.mxu0 0
          %575 = vmatpush1.bf16.xpose.msra.mxu0 0
          %576 = vmatprep.subr.bf16.mxu0 0
          %577 = vmatpush1.bf16.xpose.msra.mxu0 0
          %578 = vmatprep.subr.bf16.mxu0 0
          %579 = vmatpush1.bf16.xpose.msra.mxu0 0
          %580 = vmatprep.subr.bf16.mxu0 0
          %581 = vmatpush1.bf16.xpose.msra.mxu0 0
          %582 = vmatprep.subr.bf16.mxu0 0
          %583 = vmatpush1.bf16.xpose.msra.mxu0 0
          %584 = vmatprep.subr.bf16.mxu0 0
          %585 = vmatpush1.bf16.xpose.msra.mxu0 0
          %586 = vmatprep.subr.bf16.mxu0 0
          %587 = vmatpush1.bf16.xpose.msra.mxu0 0
          %588 = vmatprep.subr.bf16.mxu0 0
          %589 = vmatpush1.bf16.xpose.msra.mxu0 0
          %590 = vmatprep.subr.bf16.mxu0 0
          %591 = vmatpush1.bf16.xpose.msra.mxu0 0
          %592 = vmatprep.subr.bf16.mxu0 0
          %593 = vmatpush1.bf16.xpose.msra.mxu0 0
          %594 = vmatprep.subr.bf16.mxu0 0
          %595 = vmatpush1.bf16.xpose.msra.mxu0 0
          %596 = vmatprep.subr.bf16.mxu0 0
          %597 = vmatpush1.bf16.xpose.msra.mxu0 0
          %598 = vmatprep.mubr.bf16.mxu0 0
          %599 = vmatmul.mubr.bf16.gmra.mrb[0].mxu0 %v561
          %v600 = vpop.f32.mrb[0].mxu0
          %v601 = vadd.f32 %v558, %v600
          %v602 = vpop.f32.mrb[0].mxu0
          %v603 = vpop.f32.mrb[0].mxu0
          %v604 = vpop.f32.mrb[0].mxu0
          %605 = vdwg.mxu0
          %v607 = vsel %vm559, %v547, 0
          %v610 = vsel %vm559, %v551, 0
          %612 = vmatprep.subr.bf16.mxu0 0
          %613 = vmatpush1.bf16.xpose.msra.mxu0 %v610
          %614 = vmatprep.subr.bf16.mxu0 0
          %615 = vmatpush1.bf16.xpose.msra.mxu0 0
          %616 = vmatprep.subr.bf16.mxu0 0
          %617 = vmatpush1.bf16.xpose.msra.mxu0 0
          %618 = vmatprep.subr.bf16.mxu0 0
          %619 = vmatpush1.bf16.xpose.msra.mxu0 0
          %620 = vmatprep.subr.bf16.mxu0 0
          %621 = vmatpush1.bf16.xpose.msra.mxu0 0
          %622 = vmatprep.subr.bf16.mxu0 0
          %623 = vmatpush1.bf16.xpose.msra.mxu0 0
          %624 = vmatprep.subr.bf16.mxu0 0
          %625 = vmatpush1.bf16.xpose.msra.mxu0 0
          %626 = vmatprep.subr.bf16.mxu0 0
          %627 = vmatpush1.bf16.xpose.msra.mxu0 0
          %628 = vmatprep.subr.bf16.mxu0 0
          %629 = vmatpush1.bf16.xpose.msra.mxu0 0
          %630 = vmatprep.subr.bf16.mxu0 0
          %631 = vmatpush1.bf16.xpose.msra.mxu0 0
          %632 = vmatprep.subr.bf16.mxu0 0
          %633 = vmatpush1.bf16.xpose.msra.mxu0 0
          %634 = vmatprep.subr.bf16.mxu0 0
          %635 = vmatpush1.bf16.xpose.msra.mxu0 0
          %636 = vmatprep.subr.bf16.mxu0 0
          %637 = vmatpush1.bf16.xpose.msra.mxu0 0
          %638 = vmatprep.subr.bf16.mxu0 0
          %639 = vmatpush1.bf16.xpose.msra.mxu0 0
          %640 = vmatprep.subr.bf16.mxu0 0
          %641 = vmatpush1.bf16.xpose.msra.mxu0 0
          %642 = vmatprep.subr.bf16.mxu0 0
          %643 = vmatpush1.bf16.xpose.msra.mxu0 0
          %644 = vmatprep.mubr.bf16.mxu0 0
          %645 = vmatmul.mubr.bf16.gmra.mrb[0].mxu0 %v607
          %v646 = vpop.f32.mrb[0].mxu0
          %v647 = vadd.f32 %v558, %v646
          %v648 = vpop.f32.mrb[0].mxu0
          %v649 = vpop.f32.mrb[0].mxu0
          %v650 = vpop.f32.mrb[0].mxu0
          %651 = vdwg.mxu0
          %v653 = vsel %vm559, %v548, 0
          %v656 = vsel %vm559, %v552, 0
          %658 = vmatprep.subr.bf16.mxu0 0
          %659 = vmatpush1.bf16.xpose.msra.mxu0 %v656
          %660 = vmatprep.subr.bf16.mxu0 0
          %661 = vmatpush1.bf16.xpose.msra.mxu0 0
          %662 = vmatprep.subr.bf16.mxu0 0
          %663 = vmatpush1.bf16.xpose.msra.mxu0 0
          %664 = vmatprep.subr.bf16.mxu0 0
          %665 = vmatpush1.bf16.xpose.msra.mxu0 0
          %666 = vmatprep.subr.bf16.mxu0 0
          %667 = vmatpush1.bf16.xpose.msra.mxu0 0
          %668 = vmatprep.subr.bf16.mxu0 0
          %669 = vmatpush1.bf16.xpose.msra.mxu0 0
          %670 = vmatprep.subr.bf16.mxu0 0
          %671 = vmatpush1.bf16.xpose.msra.mxu0 0
          %672 = vmatprep.subr.bf16.mxu0 0
          %673 = vmatpush1.bf16.xpose.msra.mxu0 0
          %674 = vmatprep.subr.bf16.mxu0 0
          %675 = vmatpush1.bf16.xpose.msra.mxu0 0
          %676 = vmatprep.subr.bf16.mxu0 0
          %677 = vmatpush1.bf16.xpose.msra.mxu0 0
          %678 = vmatprep.subr.bf16.mxu0 0
          %679 = vmatpush1.bf16.xpose.msra.mxu0 0
          %680 = vmatprep.subr.bf16.mxu0 0
          %681 = vmatpush1.bf16.xpose.msra.mxu0 0
          %682 = vmatprep.subr.bf16.mxu0 0
          %683 = vmatpush1.bf16.xpose.msra.mxu0 0
          %684 = vmatprep.subr.bf16.mxu0 0
          %685 = vmatpush1.bf16.xpose.msra.mxu0 0
          %686 = vmatprep.subr.bf16.mxu0 0
          %687 = vmatpush1.bf16.xpose.msra.mxu0 0
          %688 = vmatprep.subr.bf16.mxu0 0
          %689 = vmatpush1.bf16.xpose.msra.mxu0 0
          %690 = vmatprep.mubr.bf16.mxu0 0
          %691 = vmatmul.mubr.bf16.gmra.mrb[0].mxu0 %v653
          %v692 = vpop.f32.mrb[0].mxu0
          %v693 = vadd.f32 %v558, %v692
          %v694 = vpop.f32.mrb[0].mxu0
          %v695 = vpop.f32.mrb[0].mxu0
          %v696 = vpop.f32.mrb[0].mxu0
          %697 = vdwg.mxu0
          %v699 = vsel %vm559, %v549, 0
          %v702 = vsel %vm559, %v553, 0
          %704 = vmatprep.subr.bf16.mxu0 0
          %705 = vmatpush1.bf16.xpose.msra.mxu0 %v702
          %706 = vmatprep.subr.bf16.mxu0 0
          %707 = vmatpush1.bf16.xpose.msra.mxu0 0
          %708 = vmatprep.subr.bf16.mxu0 0
          %709 = vmatpush1.bf16.xpose.msra.mxu0 0
          %710 = vmatprep.subr.bf16.mxu0 0
          %711 = vmatpush1.bf16.xpose.msra.mxu0 0
          %712 = vmatprep.subr.bf16.mxu0 0
          %713 = vmatpush1.bf16.xpose.msra.mxu0 0
          %714 = vmatprep.subr.bf16.mxu0 0
          %715 = vmatpush1.bf16.xpose.msra.mxu0 0
          %716 = vmatprep.subr.bf16.mxu0 0
          %717 = vmatpush1.bf16.xpose.msra.mxu0 0
          %718 = vmatprep.subr.bf16.mxu0 0
          %719 = vmatpush1.bf16.xpose.msra.mxu0 0
          %720 = vmatprep.subr.bf16.mxu0 0
          %721 = vmatpush1.bf16.xpose.msra.mxu0 0
          %722 = vmatprep.subr.bf16.mxu0 0
          %723 = vmatpush1.bf16.xpose.msra.mxu0 0
          %724 = vmatprep.subr.bf16.mxu0 0
          %725 = vmatpush1.bf16.xpose.msra.mxu0 0
          %726 = vmatprep.subr.bf16.mxu0 0
          %727 = vmatpush1.bf16.xpose.msra.mxu0 0
          %728 = vmatprep.subr.bf16.mxu0 0
          %729 = vmatpush1.bf16.xpose.msra.mxu0 0
          %730 = vmatprep.subr.bf16.mxu0 0
          %731 = vmatpush1.bf16.xpose.msra.mxu0 0
          %732 = vmatprep.subr.bf16.mxu0 0
          %733 = vmatpush1.bf16.xpose.msra.mxu0 0
          %734 = vmatprep.subr.bf16.mxu0 0
          %735 = vmatpush1.bf16.xpose.msra.mxu0 0
          %736 = vmatprep.mubr.bf16.mxu0 0
          %737 = vmatmul.mubr.bf16.gmra.mrb[0].mxu0 %v699
          %v738 = vpop.f32.mrb[0].mxu0
          %v739 = vadd.f32 %v558, %v738
          %v740 = vpop.f32.mrb[0].mxu0
          %v741 = vpop.f32.mrb[0].mxu0
          %v742 = vpop.f32.mrb[0].mxu0
          %743 = vdwg.mxu0
          %v744 = vld [vmem:[#allocation2] sm:$0xff]
          %v745 = vld [vmem:[#allocation2 + $0x8] sm:$0xff]
          %v746 = vld [vmem:[#allocation2 + $0x10] sm:$0xff]
          %v747 = vld [vmem:[#allocation2 + $0x18] sm:$0xff]
          %v748 = vsel %vm559, %v601, -inf
          %749 = vmax.xlane.f32.xlu0 %v748
          %v750 = vpop.xlane.xlu0 %749
          %v751 = vsel %vm559, %v647, -inf
          %752 = vmax.xlane.f32.xlu0 %v751
          %v753 = vpop.xlane.xlu0 %752
          %v754 = vsel %vm559, %v693, -inf
          %755 = vmax.xlane.f32.xlu0 %v754
          %v756 = vpop.xlane.xlu0 %755
          %v757 = vsel %vm559, %v739, -inf
          %758 = vmax.xlane.f32.xlu0 %v757
          %v759 = vpop.xlane.xlu0 %758
          %v760 = vmax.f32 %v744, %v750
          %v761 = vmax.f32 %v745, %v753
          %v762 = vmax.f32 %v746, %v756
          %v763 = vmax.f32 %v747, %v759
          %v764 = vsub.f32 %v744, %v760
          %v765 = vsub.f32 %v745, %v761
          %v766 = vsub.f32 %v746, %v762
          %v767 = vsub.f32 %v747, %v763
          %v768 = vmul.f32 %v764, 1.442695
          %v769 = vpow.pop %v768
          %v770 = vmul.f32 %v765, 1.442695
          %v771 = vpow.pop %v770
          %v772 = vmul.f32 %v766, 1.442695
          %v773 = vpow.pop %v772
          %v774 = vmul.f32 %v767, 1.442695
          %v775 = vpow.pop %v774
          %777 = vset.pattern.permute.xlu0 0
          %778 = vperm.xlu0 %777, %v760
          %v779 = vpop.permute.xlu0 %778
          %782 = vset.pattern.permute.xlu0 0
          %783 = vperm.xlu0 %782, %v761
          %v784 = vpop.permute.xlu0 %783
          %787 = vset.pattern.permute.xlu0 0
          %788 = vperm.xlu0 %787, %v762
          %v789 = vpop.permute.xlu0 %788
          %792 = vset.pattern.permute.xlu0 0
          %793 = vperm.xlu0 %792, %v763
          %v794 = vpop.permute.xlu0 %793
          %v796 = vsub.f32 %v601, %v779
          %v797 = vsub.f32 %v647, %v784
          %v798 = vsub.f32 %v693, %v789
          %v799 = vsub.f32 %v739, %v794
          %v800 = vmul.f32 %v796, 1.442695
          %v801 = vpow.pop %v800
          %v802 = vmul.f32 %v797, 1.442695
          %v803 = vpow.pop %v802
          %v804 = vmul.f32 %v798, 1.442695
          %v805 = vpow.pop %v804
          %v806 = vmul.f32 %v799, 1.442695
          %v807 = vpow.pop %v806
          %v808 = vld [vmem:[#allocation3] sm:$0xff]
          %v809 = vld [vmem:[#allocation3 + $0x8] sm:$0xff]
          %v810 = vld [vmem:[#allocation3 + $0x10] sm:$0xff]
          %v811 = vld [vmem:[#allocation3 + $0x18] sm:$0xff]
          %v812 = vmul.f32 %v769, %v808
          %v813 = vmul.f32 %v771, %v809
          %v814 = vmul.f32 %v773, %v810
          %v815 = vmul.f32 %v775, %v811
          %v816 = vsel %vm559, %v801, 0.0
          %817 = vadd.xlane.f32.xlu0 %v816
          %v818 = vpop.xlane.xlu0 %817
          %v819 = vsel %vm559, %v803, 0.0
          %820 = vadd.xlane.f32.xlu0 %v819
          %v821 = vpop.xlane.xlu0 %820
          %v822 = vsel %vm559, %v805, 0.0
          %823 = vadd.xlane.f32.xlu0 %v822
          %v824 = vpop.xlane.xlu0 %823
          %v825 = vsel %vm559, %v807, 0.0
          %826 = vadd.xlane.f32.xlu0 %v825
          %v827 = vpop.xlane.xlu0 %826
          %v828 = vadd.f32 %v812, %v818
          %v829 = vadd.f32 %v813, %v821
          %v830 = vadd.f32 %v814, %v824
          %v831 = vadd.f32 %v815, %v827
          %vm832 = vcmask 7168
          %833 = vst.msk [vmem:[#allocation3] sm:$0xff] %vm832, %v828
          %834 = vst.msk [vmem:[#allocation3 + $0x8] sm:$0xff] %vm832, %v829
          %835 = vst.msk [vmem:[#allocation3 + $0x10] sm:$0xff] %vm832, %v830
          %836 = vst.msk [vmem:[#allocation3 + $0x18] sm:$0xff] %vm832, %v831
          %v837 = vld [vmem:[#allocation4] sm:$0xff]
          %v838 = vld [vmem:[#allocation4 + $0x8] sm:$0xff]
          %v839 = vld [vmem:[#allocation4 + $0x10] sm:$0xff]
          %v840 = vld [vmem:[#allocation4 + $0x18] sm:$0xff]
          %842 = vset.pattern.permute.xlu0 0
          %843 = vperm.xlu0 %842, %v769
          %v844 = vpop.permute.xlu0 %843
          %847 = vset.pattern.permute.xlu0 0
          %848 = vperm.xlu0 %847, %v771
          %v849 = vpop.permute.xlu0 %848
          %852 = vset.pattern.permute.xlu0 0
          %853 = vperm.xlu0 %852, %v773
          %v854 = vpop.permute.xlu0 %853
          %857 = vset.pattern.permute.xlu0 0
          %858 = vperm.xlu0 %857, %v775
          %v859 = vpop.permute.xlu0 %858
          %v861 = vmul.f32 %v844, %v837
          %v862 = vmul.f32 %v849, %v838
          %v863 = vmul.f32 %v854, %v839
          %v864 = vmul.f32 %v859, %v840
          %v865 = vpack.c.bf16 %v801, %v801
          %v866 = vpack.c.bf16 %v803, %v803
          %v867 = vpack.c.bf16 %v805, %v805
          %v868 = vpack.c.bf16 %v807, %v807
          %v870 = vsel %vm559, %v865, 0
          %vm872 = vcmask 1043456
          %v874 = vsel %vm872, %v554, 0
          %876 = vmatprep.subr.bf16.mxu0 0
          %877 = vmatpush1.bf16.msra.mxu0 %v874
          %878 = vmatprep.subr.bf16.mxu0 0
          %879 = vmatpush1.bf16.msra.mxu0 0
          %880 = vmatprep.subr.bf16.mxu0 0
          %881 = vmatpush1.bf16.msra.mxu0 0
          %882 = vmatprep.subr.bf16.mxu0 0
          %883 = vmatpush1.bf16.msra.mxu0 0
          %884 = vmatprep.subr.bf16.mxu0 0
          %885 = vmatpush1.bf16.msra.mxu0 0
          %886 = vmatprep.subr.bf16.mxu0 0
          %887 = vmatpush1.bf16.msra.mxu0 0
          %888 = vmatprep.subr.bf16.mxu0 0
          %889 = vmatpush1.bf16.msra.mxu0 0
          %890 = vmatprep.subr.bf16.mxu0 0
          %891 = vmatpush1.bf16.msra.mxu0 0
          %892 = vmatprep.subr.bf16.mxu0 0
          %893 = vmatpush1.bf16.msra.mxu0 0
          %894 = vmatprep.subr.bf16.mxu0 0
          %895 = vmatpush1.bf16.msra.mxu0 0
          %896 = vmatprep.subr.bf16.mxu0 0
          %897 = vmatpush1.bf16.msra.mxu0 0
          %898 = vmatprep.subr.bf16.mxu0 0
          %899 = vmatpush1.bf16.msra.mxu0 0
          %900 = vmatprep.subr.bf16.mxu0 0
          %901 = vmatpush1.bf16.msra.mxu0 0
          %902 = vmatprep.subr.bf16.mxu0 0
          %903 = vmatpush1.bf16.msra.mxu0 0
          %904 = vmatprep.subr.bf16.mxu0 0
          %905 = vmatpush1.bf16.msra.mxu0 0
          %906 = vmatprep.subr.bf16.mxu0 0
          %907 = vmatpush1.bf16.msra.mxu0 0
          %908 = vmatprep.mubr.bf16.mxu0 0
          %909 = vmatmul.mubr.bf16.gmra.mrb[0].mxu0 %v870
          %v910 = vpop.f32.mrb[0].mxu0
          %v911 = vadd.f32 0.0, %v910
          %v912 = vpop.f32.mrb[0].mxu0
          %v913 = vpop.f32.mrb[0].mxu0
          %v914 = vpop.f32.mrb[0].mxu0
          %915 = vdwg.mxu0
          %v917 = vsel %vm559, %v866, 0
          %v920 = vsel %vm872, %v555, 0
          %922 = vmatprep.subr.bf16.mxu0 0
          %923 = vmatpush1.bf16.msra.mxu0 %v920
          %924 = vmatprep.subr.bf16.mxu0 0
          %925 = vmatpush1.bf16.msra.mxu0 0
          %926 = vmatprep.subr.bf16.mxu0 0
          %927 = vmatpush1.bf16.msra.mxu0 0
          %928 = vmatprep.subr.bf16.mxu0 0
          %929 = vmatpush1.bf16.msra.mxu0 0
          %930 = vmatprep.subr.bf16.mxu0 0
          %931 = vmatpush1.bf16.msra.mxu0 0
          %932 = vmatprep.subr.bf16.mxu0 0
          %933 = vmatpush1.bf16.msra.mxu0 0
          %934 = vmatprep.subr.bf16.mxu0 0
          %935 = vmatpush1.bf16.msra.mxu0 0
          %936 = vmatprep.subr.bf16.mxu0 0
          %937 = vmatpush1.bf16.msra.mxu0 0
          %938 = vmatprep.subr.bf16.mxu0 0
          %939 = vmatpush1.bf16.msra.mxu0 0
          %940 = vmatprep.subr.bf16.mxu0 0
          %941 = vmatpush1.bf16.msra.mxu0 0
          %942 = vmatprep.subr.bf16.mxu0 0
          %943 = vmatpush1.bf16.msra.mxu0 0
          %944 = vmatprep.subr.bf16.mxu0 0
          %945 = vmatpush1.bf16.msra.mxu0 0
          %946 = vmatprep.subr.bf16.mxu0 0
          %947 = vmatpush1.bf16.msra.mxu0 0
          %948 = vmatprep.subr.bf16.mxu0 0
          %949 = vmatpush1.bf16.msra.mxu0 0
          %950 = vmatprep.subr.bf16.mxu0 0
          %951 = vmatpush1.bf16.msra.mxu0 0
          %952 = vmatprep.subr.bf16.mxu0 0
          %953 = vmatpush1.bf16.msra.mxu0 0
          %954 = vmatprep.mubr.bf16.mxu0 0
          %955 = vmatmul.mubr.bf16.gmra.mrb[0].mxu0 %v917
          %v956 = vpop.f32.mrb[0].mxu0
          %v957 = vadd.f32 0.0, %v956
          %v958 = vpop.f32.mrb[0].mxu0
          %v959 = vpop.f32.mrb[0].mxu0
          %v960 = vpop.f32.mrb[0].mxu0
          %961 = vdwg.mxu0
          %v963 = vsel %vm559, %v867, 0
          %v966 = vsel %vm872, %v556, 0
          %968 = vmatprep.subr.bf16.mxu0 0
          %969 = vmatpush1.bf16.msra.mxu0 %v966
          %970 = vmatprep.subr.bf16.mxu0 0
          %971 = vmatpush1.bf16.msra.mxu0 0
          %972 = vmatprep.subr.bf16.mxu0 0
          %973 = vmatpush1.bf16.msra.mxu0 0
          %974 = vmatprep.subr.bf16.mxu0 0
          %975 = vmatpush1.bf16.msra.mxu0 0
          %976 = vmatprep.subr.bf16.mxu0 0
          %977 = vmatpush1.bf16.msra.mxu0 0
          %978 = vmatprep.subr.bf16.mxu0 0
          %979 = vmatpush1.bf16.msra.mxu0 0
          %980 = vmatprep.subr.bf16.mxu0 0
          %981 = vmatpush1.bf16.msra.mxu0 0
          %982 = vmatprep.subr.bf16.mxu0 0
          %983 = vmatpush1.bf16.msra.mxu0 0
          %984 = vmatprep.subr.bf16.mxu0 0
          %985 = vmatpush1.bf16.msra.mxu0 0
          %986 = vmatprep.subr.bf16.mxu0 0
          %987 = vmatpush1.bf16.msra.mxu0 0
          %988 = vmatprep.subr.bf16.mxu0 0
          %989 = vmatpush1.bf16.msra.mxu0 0
          %990 = vmatprep.subr.bf16.mxu0 0
          %991 = vmatpush1.bf16.msra.mxu0 0
          %992 = vmatprep.subr.bf16.mxu0 0
          %993 = vmatpush1.bf16.msra.mxu0 0
          %994 = vmatprep.subr.bf16.mxu0 0
          %995 = vmatpush1.bf16.msra.mxu0 0
          %996 = vmatprep.subr.bf16.mxu0 0
          %997 = vmatpush1.bf16.msra.mxu0 0
          %998 = vmatprep.subr.bf16.mxu0 0
          %999 = vmatpush1.bf16.msra.mxu0 0
          %1000 = vmatprep.mubr.bf16.mxu0 0
          %1001 = vmatmul.mubr.bf16.gmra.mrb[0].mxu0 %v963
          %v1002 = vpop.f32.mrb[0].mxu0
          %v1003 = vadd.f32 0.0, %v1002
          %v1004 = vpop.f32.mrb[0].mxu0
          %v1005 = vpop.f32.mrb[0].mxu0
          %v1006 = vpop.f32.mrb[0].mxu0
          %1007 = vdwg.mxu0
          %v1009 = vsel %vm559, %v868, 0
          %v1012 = vsel %vm872, %v557, 0
          %1014 = vmatprep.subr.bf16.mxu0 0
          %1015 = vmatpush1.bf16.msra.mxu0 %v1012
          %1016 = vmatprep.subr.bf16.mxu0 0
          %1017 = vmatpush1.bf16.msra.mxu0 0
          %1018 = vmatprep.subr.bf16.mxu0 0
          %1019 = vmatpush1.bf16.msra.mxu0 0
          %1020 = vmatprep.subr.bf16.mxu0 0
          %1021 = vmatpush1.bf16.msra.mxu0 0
          %1022 = vmatprep.subr.bf16.mxu0 0
          %1023 = vmatpush1.bf16.msra.mxu0 0
          %1024 = vmatprep.subr.bf16.mxu0 0
          %1025 = vmatpush1.bf16.msra.mxu0 0
          %1026 = vmatprep.subr.bf16.mxu0 0
          %1027 = vmatpush1.bf16.msra.mxu0 0
          %1028 = vmatprep.subr.bf16.mxu0 0
          %1029 = vmatpush1.bf16.msra.mxu0 0
          %1030 = vmatprep.subr.bf16.mxu0 0
          %1031 = vmatpush1.bf16.msra.mxu0 0
          %1032 = vmatprep.subr.bf16.mxu0 0
          %1033 = vmatpush1.bf16.msra.mxu0 0
          %1034 = vmatprep.subr.bf16.mxu0 0
          %1035 = vmatpush1.bf16.msra.mxu0 0
          %1036 = vmatprep.subr.bf16.mxu0 0
          %1037 = vmatpush1.bf16.msra.mxu0 0
          %1038 = vmatprep.subr.bf16.mxu0 0
          %1039 = vmatpush1.bf16.msra.mxu0 0
          %1040 = vmatprep.subr.bf16.mxu0 0
          %1041 = vmatpush1.bf16.msra.mxu0 0
          %1042 = vmatprep.subr.bf16.mxu0 0
          %1043 = vmatpush1.bf16.msra.mxu0 0
          %1044 = vmatprep.subr.bf16.mxu0 0
          %1045 = vmatpush1.bf16.msra.mxu0 0
          %1046 = vmatprep.mubr.bf16.mxu0 0
          %1047 = vmatmul.mubr.bf16.gmra.mrb[0].mxu0 %v1009
          %v1048 = vpop.f32.mrb[0].mxu0
          %v1049 = vadd.f32 0.0, %v1048
          %v1050 = vpop.f32.mrb[0].mxu0
          %v1051 = vpop.f32.mrb[0].mxu0
          %v1052 = vpop.f32.mrb[0].mxu0
          %1053 = vdwg.mxu0
          %v1054 = vadd.f32 %v861, %v911
          %v1055 = vadd.f32 %v862, %v957
          %v1056 = vadd.f32 %v863, %v1003
          %v1057 = vadd.f32 %v864, %v1049
          %1058 = vst.msk [vmem:[#allocation4] sm:$0xff] %vm559, %v1054
          %1059 = vst.msk [vmem:[#allocation4 + $0x8] sm:$0xff] %vm559, %v1055
          %1060 = vst.msk [vmem:[#allocation4 + $0x10] sm:$0xff] %vm559, %v1056
          %1061 = vst.msk [vmem:[#allocation4 + $0x18] sm:$0xff] %vm559, %v1057
          %1062 = vst.msk [vmem:[#allocation2] sm:$0xff] %vm832, %v760
          %1063 = vst.msk [vmem:[#allocation2 + $0x8] sm:$0xff] %vm832, %v761
          %1064 = vst.msk [vmem:[#allocation2 + $0x10] sm:$0xff] %vm832, %v762
          %1065 = vst.msk [vmem:[#allocation2 + $0x18] sm:$0xff] %vm832, %v763
        $region84: #{tpu_custom_call.1} parent=55 // pred_fallthru
          _
        // Predicated region
        $region85: #{tpu_custom_call.1} parent=55 // pred_check
          %p1066 = pneg %p521
        $region86: #{tpu_custom_call.1} parent=55 // pred_check_branch
          %1068 = sbr.rel (%p1066) target = $region88
        $region87: #{tpu_custom_call.1} parent=55 // pred_region
          %v1069 = vld [vmem:[#allocation3] sm:$0xff]
          %v1070 = vld [vmem:[#allocation3 + $0x8] sm:$0xff]
          %v1071 = vld [vmem:[#allocation3 + $0x10] sm:$0xff]
          %v1072 = vld [vmem:[#allocation3 + $0x18] sm:$0xff]
          %v1073 = vrcp.pop %v1069
          %v1074 = vrcp.pop %v1070
          %v1075 = vrcp.pop %v1071
          %v1076 = vrcp.pop %v1072
          %v1077 = vld [vmem:[#allocation4] sm:$0xff]
          %1079 = vset.pattern.permute.xlu0 0
          %1080 = vperm.xlu0 %1079, %v1073
          %v1081 = vpop.permute.xlu0 %1080
          %v1083 = vmul.f32 %v1077, %v1081
          %v1084 = vpack.c.bf16 %v1083, %v1083
          %vm1085 = vcmask 60416
          %1086 = vst.msk [vmem:[#allocation5] sm:$0xf] %vm1085, %v1084
          %s1087 = scalar_lea.vmem [#allocation4], 8
          %v1088 = vld [vmem:[%s1087] sm:$0xff]
          %1090 = vset.pattern.permute.xlu0 0
          %1091 = vperm.xlu0 %1090, %v1074
          %v1092 = vpop.permute.xlu0 %1091
          %v1094 = vmul.f32 %v1088, %v1092
          %v1095 = vpack.c.bf16 %v1094, %v1094
          %v1097 = vunpack.c.l.b16 %v1095
          %v1098 = vpack.c.b16 %v1097, %v1097
          %1099 = vrot.lane.b32.xlu0 %v1098, 8
          %v1100 = vpop.permute.xlu0 %1099
          %vm1102 = vcmask 126016
          %1103 = vst.msk [vmem:[#allocation5] sm:$0xf] %vm1102, %v1100
          %s1104 = scalar_lea.vmem [#allocation4], 16
          %v1105 = vld [vmem:[%s1104] sm:$0xff]
          %1107 = vset.pattern.permute.xlu0 0
          %1108 = vperm.xlu0 %1107, %v1075
          %v1109 = vpop.permute.xlu0 %1108
          %v1111 = vmul.f32 %v1105, %v1109
          %v1112 = vpack.c.bf16 %v1111, %v1111
          %v1114 = vunpack.c.l.b16 %v1112
          %v1115 = vpack.c.b16 %v1114, %v1114
          %1116 = vrot.lane.b32.xlu0 %v1115, 16
          %v1117 = vpop.permute.xlu0 %1116
          %vm1119 = vcmask 191616
          %1120 = vst.msk [vmem:[#allocation5] sm:$0xf] %vm1119, %v1117
          %s1121 = scalar_lea.vmem [#allocation4], 24
          %v1122 = vld [vmem:[%s1121] sm:$0xff]
          %1124 = vset.pattern.permute.xlu0 0
          %1125 = vperm.xlu0 %1124, %v1076
          %v1126 = vpop.permute.xlu0 %1125
          %v1128 = vmul.f32 %v1122, %v1126
          %v1129 = vpack.c.bf16 %v1128, %v1128
          %v1131 = vunpack.c.l.b16 %v1129
          %v1132 = vpack.c.b16 %v1131, %v1131
          %1133 = vrot.lane.b32.xlu0 %v1132, 24
          %v1134 = vpop.permute.xlu0 %1133
          %vm1136 = vcmask 257216
          %1137 = vst.msk [vmem:[#allocation5] sm:$0xf] %vm1136, %v1134
          %v1138 = vld [vmem:[#allocation5] sm:$0xf]
          %v1139 = vld [vmem:[%s5] sm:$0xf]
          %v1140 = vld [vmem:[%s5 + $0x4] sm:$0xf]
          %v1141 = vld [vmem:[%s5 + $0x8] sm:$0xf]
          %v1142 = vld [vmem:[%s5 + $0xc] sm:$0xf]
          %v1143 = vld [vmem:[%s6] sm:$0x1]
          %v1145 = vlaneseq
          %v1146 = vshrl.u32 %v1145, 7
          %v1147 = vsub.s32 0, %v1146
          %v1148 = vrot.slane %v1143, %v1147
          %v1154 = vunpack.c.l.b16 %v1139
          %v1155 = vunpack.c.l.b16 %v1140
          %v1156 = vunpack.c.l.b16 %v1141
          %v1157 = vunpack.c.l.b16 %v1142
          %v1158 = vpack.c.b16 %v1155, %v1154
          %v1159 = vpack.c.b16 %v1157, %v1156
          %vm1162 = vcmask 261120
          %v1164 = vsel %vm1162, %v1138, 0
          %1166 = vmatprep.subr.bf16.mxu0 0
          %1167 = vmatpush1.bf16.msra.mxu0 %v1158
          %1168 = vmatprep.subr.bf16.mxu0 0
          %1169 = vmatpush1.bf16.msra.mxu0 %v1159
          %1170 = vmatprep.subr.bf16.mxu0 0
          %1171 = vmatpush1.bf16.msra.mxu0 0
          %1172 = vmatprep.subr.bf16.mxu0 0
          %1173 = vmatpush1.bf16.msra.mxu0 0
          %1174 = vmatprep.subr.bf16.mxu0 0
          %1175 = vmatpush1.bf16.msra.mxu0 0
          %1176 = vmatprep.subr.bf16.mxu0 0
          %1177 = vmatpush1.bf16.msra.mxu0 0
          %1178 = vmatprep.subr.bf16.mxu0 0
          %1179 = vmatpush1.bf16.msra.mxu0 0
          %1180 = vmatprep.subr.bf16.mxu0 0
          %1181 = vmatpush1.bf16.msra.mxu0 0
          %1182 = vmatprep.subr.bf16.mxu0 0
          %1183 = vmatpush1.bf16.msra.mxu0 0
          %1184 = vmatprep.subr.bf16.mxu0 0
          %1185 = vmatpush1.bf16.msra.mxu0 0
          %1186 = vmatprep.subr.bf16.mxu0 0
          %1187 = vmatpush1.bf16.msra.mxu0 0
          %1188 = vmatprep.subr.bf16.mxu0 0
          %1189 = vmatpush1.bf16.msra.mxu0 0
          %1190 = vmatprep.subr.bf16.mxu0 0
          %1191 = vmatpush1.bf16.msra.mxu0 0
          %1192 = vmatprep.subr.bf16.mxu0 0
          %1193 = vmatpush1.bf16.msra.mxu0 0
          %1194 = vmatprep.subr.bf16.mxu0 0
          %1195 = vmatpush1.bf16.msra.mxu0 0
          %1196 = vmatprep.subr.bf16.mxu0 0
          %1197 = vmatpush1.bf16.msra.mxu0 0
          %1198 = vmatprep.mubr.bf16.mxu0 0
          %1199 = vmatmul.mubr.bf16.gmra.mrb[0].mxu0 %v1164
          %v1200 = vpop.f32.mrb[0].mxu0
          %v1201 = vadd.f32 %v1148, %v1200
          %v1202 = vpop.f32.mrb[0].mxu0
          %v1203 = vpop.f32.mrb[0].mxu0
          %v1204 = vpop.f32.mrb[0].mxu0
          %1205 = vdwg.mxu0
          %v1206 = vld [vmem:[%s439] sm:$0xff]
          %v1207 = vadd.f32 %v1206, %v1201
          %v1208 = vld [vmem:[%s7] sm:$0x1]
          %v1209 = vld [vmem:[%s8] sm:$0x1]
          %v1210 = vsel %vm1162, %v1207, 0.0
          %1211 = vadd.xlane.f32.xlu0 %v1210
          %v1212 = vpop.xlane.xlu0 %1211
          %v1213 = vrcp.pop 32.0
          %v1214 = vmul.f32 %v1212, %v1213
          %v1215 = vsub.f32 %v1207, %v1214
          %v1216 = vmul.f32 %v1215, %v1215
          %v1217 = vsel %vm1162, %v1216, 0.0
          %1218 = vadd.xlane.f32.xlu0 %v1217
          %v1219 = vpop.xlane.xlu0 %1218
          %v1220 = vmul.f32 %v1219, %v1213
          %v1221 = vadd.f32 %v1220, 1e-05
          %v1222 = vrsqrt.pop %v1221
          %v1223 = vmul.f32 %v1215, %v1222
          %v1225 = vlaneseq
          %v1226 = vshrl.u32 %v1225, 7
          %v1227 = vsub.s32 0, %v1226
          %v1228 = vrot.slane %v1208, %v1227
          %v1230 = vmul.f32 %v1223, %v1228
          %v1232 = vlaneseq
          %v1233 = vshrl.u32 %v1232, 7
          %v1234 = vsub.s32 0, %v1233
          %v1235 = vrot.slane %v1209, %v1234
          %v1237 = vadd.f32 %v1230, %v1235
          %1238 = vst.msk [vmem:[%s519] sm:$0xff] %vm1162, %v1237
        $region88: #{tpu_custom_call.1} parent=55 // pred_fallthru
          _
        %s1239 = sand.u32 %s285, 1
        %s1240 = scalar_lea.sflag [#allocation8], %s1239
        %s1241 = sand.u32 %s285, 1
        %s1242 = smul.addr %s1241, 8
        %s1243 = scalar_lea.vmem [#allocation15], %s1242
        // Predicated region
        $region89: #{tpu_custom_call.1} parent=55 // pred_check
          %p1244 = pneg %p295
        $region90: #{tpu_custom_call.1} parent=55 // pred_check_branch
          %1246 = sbr.rel (%p1244) target = $region92
        $region91: #{tpu_custom_call.1} parent=55 // pred_region
          %s1248 = ssub.s32 128, 128
          %1249 = vsyncadd %s1240, %s1248
          %s1250 = sadd.s32 %s38, %s37
          %s1251 = smul.addr %s1250, 128
          %s1252 = scalar_lea.hbm %s9, %s1251
          %s1254 = sshll.u32 %s1243, 4
          %s1255 = int_to_ptr.vmem [resolvable:$true] %s1254
          %1257 = dma.vmem_to_hbm [thread:$0]  %s1255, 128, %s1252, %s1240
        $region92: #{tpu_custom_call.1} parent=55 // pred_fallthru
          _
      $region56: #{tpu_custom_call.1} parent=5 // pred_fallthru
        _
      %p1258 = scmp.le.s32.totalorder 2, %s27
      // Predicated region
      $region93: #{tpu_custom_call.1} parent=5 // pred_check
        %p1259 = pneg %p1258
      $region94: #{tpu_custom_call.1} parent=5 // pred_check_branch
        %1261 = sbr.rel (%p1259) target = $region96
      $region95: #{tpu_custom_call.1} parent=5 // pred_region
        %s1262 = ssub.s32 %s27, 2
        // Predicated region
        $region97: #{tpu_custom_call.1} parent=95 // pred_check
          %p1263 = pneg %p301
        $region98: #{tpu_custom_call.1} parent=95 // pred_check_branch
          %1265 = sbr.rel (%p1263) target = $region100
        $region99: #{tpu_custom_call.1} parent=95 // pred_region
          %s1266 = sand.u32 %s286, 1
          %s1267 = scalar_lea.sflag [#allocation8], %s1266
          %s1268 = sand.u32 %s286, 1
          %s1269 = smul.addr %s1268, 8
          %s1270 = scalar_lea.vmem [#allocation15], %s1269
          %1271 = dma.done %s1267, 128
        $region100: #{tpu_custom_call.1} parent=95 // pred_fallthru
          _
      $region96: #{tpu_custom_call.1} parent=5 // pred_fallthru
        _
    $region6: #{tpu_custom_call.1} parent=1 // loop_footer
      %s31 = sadd.s32 1, %s27
    $region7: #{tpu_custom_call.1} parent=1 // loop_footer_branch
      %26 = sbr.rel target = $region3
    $region8: #{tpu_custom_call.1} parent=1 // loop_exit
      _
    %1272 = vsyncpa [#allocation7], 1
    %s1273 = scalar_lea.sflag [#allocation7], 1
    %1274 = vsyncpa %s1273, 1
    %1275 = vsyncpa [#allocation10], 1
    %s1276 = scalar_lea.sflag [#allocation10], 1
    %1277 = vsyncpa %s1276, 1
    %1278 = vsyncpa [#allocation13], 1
    %s1279 = scalar_lea.sflag [#allocation13], 1
    %1280 = vsyncpa %s1279, 1
    %1281 = vsyncpa [#allocation8], 1
    %s1282 = scalar_lea.sflag [#allocation8], 1
    %1283 = vsyncpa %s1282, 1

</llo_original>
